<compile_context>
chip_gen: v7x
topology: tpu7x:2x2x1
jax: 0.10.0
libtpu: 0.0.40
codegen_flags: <defaults>
</compile_context>

<pallas_src>
import jax
import jax.numpy as jnp
from jax import lax
from jax.experimental import pallas as pl
from jax.experimental.pallas import tpu as pltpu


def _cdiv(a, b):
    return (a + b - 1) // b


def _round_up(a, b):
    return _cdiv(a, b) * b


# --------------------------------------------------------------------------- #
# Kernel
# --------------------------------------------------------------------------- #
def _aux_kernel(xcol_ref, w1_ref, shift_ref, w2_ref, b2_ref, out_ref):
    # xcol_ref : (1, TR, K)     bf16  im2col'd input rows (K = 9*Cin)
    # w1_ref   : (K, Cmid)      bf16  3x3 conv weights, BN scale pre-folded in
    # shift_ref: (1, Cmid)      f32   folded conv-bias + BatchNorm shift
    # w2_ref   : (Cmid, CoutP)  bf16  1x1 conv weights
    # b2_ref   : (1, CoutP)     f32   1x1 conv bias
    # out_ref  : (1, TR, CoutP) bf16

    # 3x3 conv == single (TR, K) x (K, Cmid) MXU matmul, f32 accumulation.
    h = jnp.dot(xcol_ref[0], w1_ref[...], preferred_element_type=jnp.float32)

    # BN scale is already folded into the w1 columns; only shift + ReLU here.
    h = jnp.maximum(h + shift_ref[...], 0.0)

    # TODO(synk): Dropout2d(0.1) is identity in eval mode; train-mode
    # per-channel dropout and train-mode BN statistics are not implemented.

    # 1x1 conv == (TR, Cmid) x (Cmid, CoutP) MXU matmul, f32 accumulation,
    # bf16 store (halves the dominant HBM writeback stream).
    out = jnp.dot(h.astype(jnp.bfloat16), w2_ref[...],
                  preferred_element_type=jnp.float32)
    out_ref[...] = (out + b2_ref[...]).astype(out_ref.dtype).reshape(out_ref.shape)


# --------------------------------------------------------------------------- #
# Wrappers
# --------------------------------------------------------------------------- #
def aux_module_forward_nhwc(x_nhwc, params, eps=1e-5, row_tile=1024,
                            lane_dense_out=False):
    """Fused aux-head forward in NHWC (preferred entry point: no layout
    transposes). Returns (N, H, W, num_classes) in bfloat16."""
    N, H, W, Cin = x_nhwc.shape
    w1 = params["conv1_w"]   # (Cmid, Cin, 3, 3) OIHW
    b1 = params["conv1_b"]   # (Cmid,)
    gamma = params["bn_gamma"]
    beta = params["bn_beta"]
    mean = params["bn_mean"]
    var = params["bn_var"]
    w2 = params["conv2_w"]   # (Cout, Cmid, 1, 1)
    b2 = params["conv2_b"]   # (Cout,)
    Cmid = w1.shape[0]
    Cout = w2.shape[0]

    # Output-channel padding (perf review):
    #  * lane_dense_out=False (default): last dim == Cout (full array dim, so
    #    the block is legal). Stores are masked in-core but HBM writeback
    #    drops ~128/Cout x -- the better trade at HBM-bound sizes (v5e/v6e).
    #  * lane_dense_out=True: pad to 128 for unmasked lane-dense stores
    #    (worth measuring on v7x, whose HBM is much faster).
    CoutP = _round_up(max(Cout, 128), 128) if lane_dense_out else Cout
    K = 9 * Cin

    # ---- im2col (plain JAX, wrapper-side) -----------------------------------
    # Cin is tiny for this aux head, so folding the 9 taps into K gives one
    # well-shaped MXU matmul per tile.
    # TODO(synk): for production Cin (>=64) move the 9-tap accumulation
    # in-kernel (halo'd NHWC row-block DMA) to avoid the 9x-expanded HBM copy.
    xb = x_nhwc.astype(jnp.bfloat16)
    xpad = jnp.pad(xb, ((0, 0), (1, 1), (1, 1), (0, 0)))
    taps = [xpad[:, ky:ky + H, kx:kx + W, :]
            for ky in range(3) for kx in range(3)]
    xcol = jnp.concatenate(taps, axis=-1).reshape(N, H * W, K)

    # ---- row tiling ----------------------------------------------------------
    HW = H * W
    TR = min(row_tile, _round_up(HW, 16))
    if N == 1:
        # v7x megacore: ensure >=2 grid points so both TensorCores get work
        # (no-op on single-TC v5e/v6e; harmless for tiny inputs).
        TR = min(TR, max(16, _round_up(_cdiv(HW, 2), 16)))
    # Clamp TR so double-buffered blocks + weights stay well inside v7x's
    # 64 MiB physical VMEM (conservative ~24 MiB budget; v5e/v6e have 128 MiB).
    bytes_per_row = 2 * K + 2 * CoutP + 4 * Cmid          # xcol + out + f32 h
    weight_bytes = 2 * K * Cmid + 2 * Cmid * CoutP
    budget = 24 * 1024 * 1024
    max_tr = max(16, ((budget - 2 * weight_bytes) // (2 * bytes_per_row)) // 16 * 16)
    TR = min(TR, max_tr)
    HWp = _round_up(HW, TR)
    if HWp != HW:
        xcol = jnp.pad(xcol, ((0, 0), (0, HWp - HW), (0, 0)))

    # ---- parameter folding ---------------------------------------------------
    bn_scale = (gamma / jnp.sqrt(var + eps)).astype(jnp.float32)
    w1_col = jnp.transpose(w1, (2, 3, 1, 0)).reshape(K, Cmid)   # (ky,kx,cin) rows
    w1_col = (w1_col * bn_scale[None, :]).astype(jnp.bfloat16)  # BN scale folded
    shift = ((b1 - mean) * bn_scale + beta).reshape(1, Cmid).astype(jnp.float32)
    w2_m = jnp.transpose(w2[:, :, 0, 0], (1, 0))                # (Cmid, Cout)
    b2_m = b2.reshape(1, Cout)
    if CoutP != Cout:
        w2_m = jnp.pad(w2_m, ((0, 0), (0, CoutP - Cout)))
        b2_m = jnp.pad(b2_m, ((0, 0), (0, CoutP - Cout)))
    w2_p = w2_m.astype(jnp.bfloat16)
    b2_p = b2_m.astype(jnp.float32)

    # ---- pallas_call ---------------------------------------------------------
    grid = (N, HWp // TR)

    def build(const_spec):
        return pl.pallas_call(
            _aux_kernel,
            out_shape=jax.ShapeDtypeStruct((N, HWp, CoutP), jnp.bfloat16),
            grid_spec=pltpu.PrefetchScalarGridSpec(
                num_scalar_prefetch=0,
                grid=grid,
                in_specs=[
                    pl.BlockSpec((1, TR, K), lambda n, r: (n, r, 0)),
                    const_spec((K, Cmid)),
                    const_spec((1, Cmid)),
                    const_spec((Cmid, CoutP)),
                    const_spec((1, CoutP)),
                ],
                out_specs=pl.BlockSpec((1, TR, CoutP), lambda n, r: (n, r, 0)),
            ),
            compiler_params=pltpu.CompilerParams(
                # Every grid point writes a distinct output block -> both axes
                # may shard across TensorCores (2x on v7x megacore; no-op on
                # single-TC v5e/v6e).
                dimension_semantics=("parallel", "parallel"),
                vmem_limit_bytes=32 * 1024 * 1024,
            ),
        )

    def _buffered(shape):
        # Grid-invariant operand: single buffer, no redundant double buffer.
        return pl.BlockSpec(shape, lambda n, r: (0,) * len(shape),
                            pipeline_mode=pl.Buffered(1))

    def _plain(shape):
        return pl.BlockSpec(shape, lambda n, r: (0,) * len(shape))

    args = (xcol, w1_col, shift, w2_p, b2_p)
    try:
        out = build(_buffered)(*args)
    except Exception:
        # pipeline_mode / Buffered(1) unsupported in this JAX build -> default
        # double-buffered specs (correctness identical).
        out = build(_plain)(*args)

    out = out[:, :HW, :]
    if CoutP != Cout:
        out = out[:, :, :Cout]
    return out.reshape(N, H, W, Cout)


def aux_module_forward(x_nchw, params, eps=1e-5, **kwargs):
    """NCHW (PyTorch-parity) wrapper around the NHWC forward; casts back to the
    input dtype. Prefer `aux_module_forward_nhwc` end-to-end: each NCHW<->NHWC
    transpose is an extra full HBM pass for this small, memory-bound head."""
    x_nhwc = jnp.transpose(x_nchw, (0, 2, 3, 1))
    out = aux_module_forward_nhwc(x_nhwc, params, eps=eps, **kwargs)
    return jnp.transpose(out, (0, 3, 1, 2)).astype(x_nchw.dtype)


# --------------------------------------------------------------------------- #
# Pure-JAX references
# --------------------------------------------------------------------------- #
def _reference_mirror(x_nchw, params, eps=1e-5):
    """Reference mirroring the kernel's numerics exactly: BN scale folded into
    the bf16 3x3 weights, bf16 matmul inputs, f32 accumulation, bf16 output."""
    w1 = params["conv1_w"]; b1 = params["conv1_b"]
    gamma = params["bn_gamma"]; beta = params["bn_beta"]
    mean = params["bn_mean"]; var = params["bn_var"]
    w2 = params["conv2_w"]; b2 = params["conv2_b"]

    bn_scale = gamma / jnp.sqrt(var + eps)
    x = jnp.transpose(x_nchw, (0, 2, 3, 1))
    w1_hwio = jnp.transpose(w1, (2, 3, 1, 0)) * bn_scale       # fold BN scale
    y = lax.conv_general_dilated(
        x.astype(jnp.bfloat16), w1_hwio.astype(jnp.bfloat16),
        window_strides=(1, 1), padding="SAME",
        dimension_numbers=("NHWC", "HWIO", "NHWC"),
        preferred_element_type=jnp.float32)
    y = jnp.maximum(y + ((b1 - mean) * bn_scale + beta), 0.0)
    w2_m = jnp.transpose(w2[:, :, 0, 0], (1, 0))
    y = jnp.einsum("nhwc,co->nhwo", y.astype(jnp.bfloat16),
                   w2_m.astype(jnp.bfloat16),
                   preferred_element_type=jnp.float32) + b2
    y = y.astype(jnp.bfloat16).astype(jnp.float32)             # bf16 output
    return jnp.transpose(y, (0, 3, 1, 2))


def _reference_f32(x_nchw, params, eps=1e-5):
    """Full-f32 reference of conv -> BN -> ReLU -> conv (PyTorch semantics)."""
    w1 = params["conv1_w"]; b1 = params["conv1_b"]
    gamma = params["bn_gamma"]; beta = params["bn_beta"]
    mean = params["bn_mean"]; var = params["bn_var"]
    w2 = params["conv2_w"]; b2 = params["conv2_b"]

    x = jnp.transpose(x_nchw, (0, 2, 3, 1)).astype(jnp.float32)
    w1_hwio = jnp.transpose(w1, (2, 3, 1, 0)).astype(jnp.float32)
    y = lax.conv_general_dilated(
        x, w1_hwio, window_strides=(1, 1), padding="SAME",
        dimension_numbers=("NHWC", "HWIO", "NHWC")) + b1
    y = (y - mean) * (gamma / jnp.sqrt(var + eps)) + beta
    y = jnp.maximum(y, 0.0)
    w2_m = jnp.transpose(w2[:, :, 0, 0], (1, 0))
    y = jnp.einsum("nhwc,co->nhwo", y, w2_m) + b2
    return jnp.transpose(y, (0, 3, 1, 2))


def _init_params(key, in_planes, mid, num_classes):
    ks = jax.random.split(key, 8)
    return {
        "conv1_w": 0.1 * jax.random.normal(ks[0], (mid, in_planes, 3, 3), jnp.float32),
        "conv1_b": 0.1 * jax.random.normal(ks[1], (mid,), jnp.float32),
        "bn_gamma": 1.0 + 0.1 * jax.random.normal(ks[2], (mid,), jnp.float32),
        "bn_beta": 0.1 * jax.random.normal(ks[3], (mid,), jnp.float32),
        "bn_mean": 0.1 * jax.random.normal(ks[4], (mid,), jnp.float32),
        "bn_var": jnp.abs(jax.random.normal(ks[5], (mid,), jnp.float32)) + 0.5,
        "conv2_w": 0.1 * jax.random.normal(ks[6], (num_classes, mid, 1, 1), jnp.float32),
        "conv2_b": 0.1 * jax.random.normal(ks[7], (num_classes,), jnp.float32),
    }


if __name__ == "__main__":
    key = jax.random.PRNGKey(0)
    k_x, k_p = jax.random.split(key)

    N, in_planes, H, W = 2, 4, 16, 16
    num_classes, mid = 19, 256

    x = jax.random.normal(k_x, (N, in_planes, H, W), jnp.float32)  # NCHW
    params = _init_params(k_p, in_planes, mid, num_classes)

    out = jax.block_until_ready(aux_module_forward(x, params))
    assert out.shape == (N, num_classes, H, W), out.shape

    # Tight check against a reference that mirrors the kernel's bf16 numerics
    # (bf16 matmul inputs, BN scale folded into weights, bf16 output).
    ref_m = jax.block_until_ready(_reference_mirror(x, params))
    err_m = float(jnp.max(jnp.abs(out - ref_m)))
    assert err_m < 3e-2, f"max abs err vs bf16-mirror reference: {err_m}"

    # Loose sanity check against the full-f32 reference (bf16 rounding only).
    ref_f = jax.block_until_ready(_reference_f32(x, params))
    err_f = float(jnp.max(jnp.abs(out - ref_f)))
    assert err_f < 2e-1, f"max abs err vs f32 reference: {err_f}"

    print("KERNEL_OK")
</pallas_src>

<mosaic_0001>
module attributes {stable_mosaic.version = 11 : i64} {
  func.func @_aux_kernel(%arg0: i32, %arg1: i32, %arg2: memref<1x256x36xbf16, #tpu.memory_space<vmem>>, %arg3: memref<36x256xbf16, #tpu.memory_space<vmem>>, %arg4: memref<1x256xf32, #tpu.memory_space<vmem>>, %arg5: memref<256x19xbf16, #tpu.memory_space<vmem>>, %arg6: memref<1x19xf32, #tpu.memory_space<vmem>>, %arg7: memref<1x256x19xbf16, #tpu.memory_space<vmem>>) attributes {dimension_semantics = [#tpu.dimension_semantics<parallel>, #tpu.dimension_semantics<parallel>], iteration_bounds = array<i64: 2, 1>, scalar_prefetch = 0 : i64, scratch_operands = 0 : i64, tpu.core_type = #tpu.core_type<tc>, window_params = [{transform_indices = @transform_0, window_bounds = array<i64: 1, 256, 36>}, {pipeline_mode = #tpu.pipeline_mode<synchronous>, transform_indices = @transform_1, window_bounds = array<i64: 36, 256>}, {pipeline_mode = #tpu.pipeline_mode<synchronous>, transform_indices = @transform_2, window_bounds = array<i64: 1, 256>}, {pipeline_mode = #tpu.pipeline_mode<synchronous>, transform_indices = @transform_3, window_bounds = array<i64: 256, 19>}, {pipeline_mode = #tpu.pipeline_mode<synchronous>, transform_indices = @transform_4, window_bounds = array<i64: 1, 19>}, {transform_indices = @transform_5, window_bounds = array<i64: 1, 256, 19>}]} {
    %c0 = arith.constant 0 : index
    %c0_0 = arith.constant 0 : index
    %c0_1 = arith.constant 0 : index
    %0 = vector.load %arg2[%c0, %c0_0, %c0_1] : memref<1x256x36xbf16, #tpu.memory_space<vmem>>, vector<1x256x36xbf16>
    %1 = vector.shape_cast %0 : vector<1x256x36xbf16> to vector<256x36xbf16>
    %c0_2 = arith.constant 0 : index
    %c0_3 = arith.constant 0 : index
    %2 = vector.load %arg3[%c0_2, %c0_3] : memref<36x256xbf16, #tpu.memory_space<vmem>>, vector<36x256xbf16>
    %cst = arith.constant dense<0.000000e+00> : vector<256x256xf32>
    %3 = tpu.matmul %1, %2, %cst {dimension_numbers = #tpu.dot_dimension_numbers<[1], [0], [0], [1], [0, 0, 1, 1], [], []>} : vector<256x36xbf16>, vector<36x256xbf16>, vector<256x256xf32> -> vector<256x256xf32>
    %c0_4 = arith.constant 0 : index
    %c0_5 = arith.constant 0 : index
    %4 = vector.load %arg4[%c0_4, %c0_5] : memref<1x256xf32, #tpu.memory_space<vmem>>, vector<1x256xf32>
    %5 = vector.broadcast %4 : vector<1x256xf32> to vector<256x256xf32>
    %6 = arith.addf %3, %5 : vector<256x256xf32>
    %cst_6 = arith.constant 0.000000e+00 : f32
    %7 = vector.broadcast %cst_6 : f32 to vector<256x256xf32>
    %8 = arith.maximumf %6, %7 : vector<256x256xf32>
    %9 = arith.truncf %8 : vector<256x256xf32> to vector<256x256xbf16>
    %c0_7 = arith.constant 0 : index
    %c0_8 = arith.constant 0 : index
    %10 = vector.load %arg5[%c0_7, %c0_8] : memref<256x19xbf16, #tpu.memory_space<vmem>>, vector<256x19xbf16>
    %cst_9 = arith.constant dense<0.000000e+00> : vector<256x19xf32>
    %11 = tpu.matmul %9, %10, %cst_9 {dimension_numbers = #tpu.dot_dimension_numbers<[1], [0], [0], [1], [0, 0, 1, 1], [], []>} : vector<256x256xbf16>, vector<256x19xbf16>, vector<256x19xf32> -> vector<256x19xf32>
    %c0_10 = arith.constant 0 : index
    %c0_11 = arith.constant 0 : index
    %12 = vector.load %arg6[%c0_10, %c0_11] : memref<1x19xf32, #tpu.memory_space<vmem>>, vector<1x19xf32>
    %13 = vector.broadcast %12 : vector<1x19xf32> to vector<256x19xf32>
    %14 = arith.addf %11, %13 : vector<256x19xf32>
    %15 = arith.truncf %14 : vector<256x19xf32> to vector<256x19xbf16>
    %16 = vector.shape_cast %15 : vector<256x19xbf16> to vector<1x256x19xbf16>
    %c0_12 = arith.constant 0 : index
    %c0_13 = arith.constant 0 : index
    %c0_14 = arith.constant 0 : index
    %17 = vector.load %arg7[%c0_12, %c0_13, %c0_14] : memref<1x256x19xbf16, #tpu.memory_space<vmem>>, vector<1x256x19xbf16>
    tpu.vector_store %arg7[%c0_12, %c0_13, %c0_14], %16 {strides = array<i32>} : memref<1x256x19xbf16, #tpu.memory_space<vmem>>, vector<1x256x19xbf16>,
    return
  }
  func.func @transform_0(%arg0: i32, %arg1: i32) -> (i32, i32, i32) {
    %c0_i32 = arith.constant 0 : i32
    %c0_i32_0 = arith.constant 0 : i32
    return %arg0, %arg1, %c0_i32 : i32, i32, i32
  }
  func.func @transform_1(%arg0: i32, %arg1: i32) -> (i32, i32) {
    %c0_i32 = arith.constant 0 : i32
    %c0_i32_0 = arith.constant 0 : i32
    %c0_i32_1 = arith.constant 0 : i32
    return %c0_i32, %c0_i32_0 : i32, i32
  }
  func.func @transform_2(%arg0: i32, %arg1: i32) -> (i32, i32) {
    %c0_i32 = arith.constant 0 : i32
    %c0_i32_0 = arith.constant 0 : i32
    %c0_i32_1 = arith.constant 0 : i32
    return %c0_i32, %c0_i32_0 : i32, i32
  }
  func.func @transform_3(%arg0: i32, %arg1: i32) -> (i32, i32) {
    %c0_i32 = arith.constant 0 : i32
    %c0_i32_0 = arith.constant 0 : i32
    %c0_i32_1 = arith.constant 0 : i32
    return %c0_i32, %c0_i32_0 : i32, i32
  }
  func.func @transform_4(%arg0: i32, %arg1: i32) -> (i32, i32) {
    %c0_i32 = arith.constant 0 : i32
    %c0_i32_0 = arith.constant 0 : i32
    %c0_i32_1 = arith.constant 0 : i32
    return %c0_i32, %c0_i32_0 : i32, i32
  }
  func.func @transform_5(%arg0: i32, %arg1: i32) -> (i32, i32, i32) {
    %c0_i32 = arith.constant 0 : i32
    %c0_i32_0 = arith.constant 0 : i32
    return %arg0, %arg1, %c0_i32 : i32, i32, i32
  }
}

module attributes {stable_mosaic.version = 11 : i64} {
  func.func @_aux_kernel(%arg0: i32, %arg1: i32, %arg2: memref<1x256x36xbf16, #tpu.memory_space<vmem>>, %arg3: memref<36x256xbf16, #tpu.memory_space<vmem>>, %arg4: memref<1x256xf32, #tpu.memory_space<vmem>>, %arg5: memref<256x19xbf16, #tpu.memory_space<vmem>>, %arg6: memref<1x19xf32, #tpu.memory_space<vmem>>, %arg7: memref<1x256x19xbf16, #tpu.memory_space<vmem>>) attributes {dimension_semantics = [#tpu.dimension_semantics<parallel>, #tpu.dimension_semantics<parallel>], iteration_bounds = array<i64: 2, 1>, scalar_prefetch = 0 : i64, scratch_operands = 0 : i64, tpu.core_type = #tpu.core_type<tc>, window_params = [{transform_indices = @transform_0, window_bounds = array<i64: 1, 256, 36>}, {pipeline_mode = #tpu.pipeline_mode<synchronous>, transform_indices = @transform_1, window_bounds = array<i64: 36, 256>}, {pipeline_mode = #tpu.pipeline_mode<synchronous>, transform_indices = @transform_2, window_bounds = array<i64: 1, 256>}, {pipeline_mode = #tpu.pipeline_mode<synchronous>, transform_indices = @transform_3, window_bounds = array<i64: 256, 19>}, {pipeline_mode = #tpu.pipeline_mode<synchronous>, transform_indices = @transform_4, window_bounds = array<i64: 1, 19>}, {transform_indices = @transform_5, window_bounds = array<i64: 1, 256, 19>}]} {
    %c0 = arith.constant 0 : index
    %c0_0 = arith.constant 0 : index
    %c0_1 = arith.constant 0 : index
    %0 = vector.load %arg2[%c0, %c0_0, %c0_1] : memref<1x256x36xbf16, #tpu.memory_space<vmem>>, vector<1x256x36xbf16>
    %1 = vector.shape_cast %0 : vector<1x256x36xbf16> to vector<256x36xbf16>
    %c0_2 = arith.constant 0 : index
    %c0_3 = arith.constant 0 : index
    %2 = vector.load %arg3[%c0_2, %c0_3] : memref<36x256xbf16, #tpu.memory_space<vmem>>, vector<36x256xbf16>
    %cst = arith.constant dense<0.000000e+00> : vector<256x256xf32>
    %3 = tpu.matmul %1, %2, %cst {dimension_numbers = #tpu.dot_dimension_numbers<[1], [0], [0], [1], [0, 0, 1, 1], [], []>} : vector<256x36xbf16>, vector<36x256xbf16>, vector<256x256xf32> -> vector<256x256xf32>
    %c0_4 = arith.constant 0 : index
    %c0_5 = arith.constant 0 : index
    %4 = vector.load %arg4[%c0_4, %c0_5] : memref<1x256xf32, #tpu.memory_space<vmem>>, vector<1x256xf32>
    %5 = vector.broadcast %4 : vector<1x256xf32> to vector<256x256xf32>
    %6 = arith.addf %3, %5 : vector<256x256xf32>
    %cst_6 = arith.constant 0.000000e+00 : f32
    %7 = vector.broadcast %cst_6 : f32 to vector<256x256xf32>
    %8 = arith.maximumf %6, %7 : vector<256x256xf32>
    %9 = arith.truncf %8 : vector<256x256xf32> to vector<256x256xbf16>
    %c0_7 = arith.constant 0 : index
    %c0_8 = arith.constant 0 : index
    %10 = vector.load %arg5[%c0_7, %c0_8] : memref<256x19xbf16, #tpu.memory_space<vmem>>, vector<256x19xbf16>
    %cst_9 = arith.constant dense<0.000000e+00> : vector<256x19xf32>
    %11 = tpu.matmul %9, %10, %cst_9 {dimension_numbers = #tpu.dot_dimension_numbers<[1], [0], [0], [1], [0, 0, 1, 1], [], []>} : vector<256x256xbf16>, vector<256x19xbf16>, vector<256x19xf32> -> vector<256x19xf32>
    %c0_10 = arith.constant 0 : index
    %c0_11 = arith.constant 0 : index
    %12 = vector.load %arg6[%c0_10, %c0_11] : memref<1x19xf32, #tpu.memory_space<vmem>>, vector<1x19xf32>
    %13 = vector.broadcast %12 : vector<1x19xf32> to vector<256x19xf32>
    %14 = arith.addf %11, %13 : vector<256x19xf32>
    %15 = arith.truncf %14 : vector<256x19xf32> to vector<256x19xbf16>
    %16 = vector.shape_cast %15 : vector<256x19xbf16> to vector<1x256x19xbf16>
    %c0_12 = arith.constant 0 : index
    %c0_13 = arith.constant 0 : index
    %c0_14 = arith.constant 0 : index
    %17 = vector.load %arg7[%c0_12, %c0_13, %c0_14] : memref<1x256x19xbf16, #tpu.memory_space<vmem>>, vector<1x256x19xbf16>
    tpu.vector_store %arg7[%c0_12, %c0_13, %c0_14], %16 {strides = array<i32>} : memref<1x256x19xbf16, #tpu.memory_space<vmem>>, vector<1x256x19xbf16>,
    return
  }
  func.func @transform_0(%arg0: i32, %arg1: i32) -> (i32, i32, i32) {
    %c0_i32 = arith.constant 0 : i32
    %c0_i32_0 = arith.constant 0 : i32
    return %arg0, %arg1, %c0_i32 : i32, i32, i32
  }
  func.func @transform_1(%arg0: i32, %arg1: i32) -> (i32, i32) {
    %c0_i32 = arith.constant 0 : i32
    %c0_i32_0 = arith.constant 0 : i32
    %c0_i32_1 = arith.constant 0 : i32
    return %c0_i32, %c0_i32_0 : i32, i32
  }
  func.func @transform_2(%arg0: i32, %arg1: i32) -> (i32, i32) {
    %c0_i32 = arith.constant 0 : i32
    %c0_i32_0 = arith.constant 0 : i32
    %c0_i32_1 = arith.constant 0 : i32
    return %c0_i32, %c0_i32_0 : i32, i32
  }
  func.func @transform_3(%arg0: i32, %arg1: i32) -> (i32, i32) {
    %c0_i32 = arith.constant 0 : i32
    %c0_i32_0 = arith.constant 0 : i32
    %c0_i32_1 = arith.constant 0 : i32
    return %c0_i32, %c0_i32_0 : i32, i32
  }
  func.func @transform_4(%arg0: i32, %arg1: i32) -> (i32, i32) {
    %c0_i32 = arith.constant 0 : i32
    %c0_i32_0 = arith.constant 0 : i32
    %c0_i32_1 = arith.constant 0 : i32
    return %c0_i32, %c0_i32_0 : i32, i32
  }
  func.func @transform_5(%arg0: i32, %arg1: i32) -> (i32, i32, i32) {
    %c0_i32 = arith.constant 0 : i32
    %c0_i32_0 = arith.constant 0 : i32
    return %arg0, %arg1, %c0_i32 : i32, i32, i32
  }
}

</mosaic_0001>

<llo_original>
// kernel: tpu_custom_call.1
$region0: #{tpu_custom_call.1}
  #allocation0 [shape = 'u32[]', space=smem, size = 0x4, offset = 0x4, fixed_abs, tag = 'smem constant byte address 0x4 - core index']
  #allocation1 [shape = 'u32[144,128]{1,0:T(1,128)}', space=vmem, size = 0x12000, scoped, tag = 'internal scratch']
  %s0 = inlined_call_operand.vmem [shape: bf16[2,256,36], index: 0, kind: input, shape index: {}]
  %s1 = inlined_call_operand.vmem [shape: bf16[36,256], index: 1, kind: input, shape index: {}]
  %s2 = inlined_call_operand.vmem [shape: f32[1,256], index: 2, kind: input, shape index: {}]
  %s3 = inlined_call_operand.vmem [shape: bf16[256,19], index: 3, kind: input, shape index: {}]
  %s4 = inlined_call_operand.vmem [shape: f32[1,19], index: 4, kind: input, shape index: {}]
  %s5 = inlined_call_operand.vmem [shape: bf16[2,256,19], index: 5, kind: output, shape index: {}]
  %s6 = sld [smem:[#allocation0]]
  $region53: #{tpu_custom_call.1} parent=0
    _
  %s8 = ssub.s32 1, %s6
  %s9 = scalar_select 0, %s8, %s6
  loop: start=0, step=1, limit=4
  $region2: #{tpu_custom_call.1} parent=0 // loop_pre_header
    _
  $region3: #{tpu_custom_call.1} parent=0 // loop_header
    %s11 = sphi 0, %s15
    %p12 = scmp.ge.s32.totalorder %s11, 4
    %s18 = sphi 0, %s30
    %s19 = sphi 0, %s26
    %s20 = sphi 0, %s18
    %s21 = sphi 0, %s19
    %s22 = sphi 0, %s20
    %s23 = sphi 0, %s21
    %s35 = sphi 0, %s37
    %s38 = sphi 0, %s35
    %s39 = sphi 0, %s38
    %s55 = sphi 0, %s39
    %s59 = sphi 0, %s59
    %s61 = sphi 0, %s59
    %s62 = sphi 0, %s61
    %s76 = sphi 0, %s62
    %s80 = sphi 0, %s80
    %s82 = sphi 0, %s80
    %s83 = sphi 0, %s82
    %s97 = sphi 0, %s83
    %s101 = sphi 0, %s101
    %s103 = sphi 0, %s101
    %s104 = sphi 0, %s103
    %s118 = sphi 0, %s104
    %s122 = sphi 0, %s122
    %s124 = sphi 0, %s122
    %s125 = sphi 0, %s124
    %s139 = sphi 0, %s125
    %s147 = sphi 0, %s149
    %s150 = sphi 0, %s147
    %s151 = sphi 0, %s150
    %s167 = sphi 0, %s151
  $region4: #{tpu_custom_call.1} parent=0 // loop_header_branch
    %14 = sbr.rel (%p12) target = $region8
  $region5: #{tpu_custom_call.1} parent=0 // loop_body
    %s16 = ssub.s32 %s11, 1
    %s17 = ssub.s32 %s11, 2
    %s24 = sadd.s32 1, %s19
    %p25 = scmp.ge.s32.totalorder %s24, 1
    %s26 = scalar_select %p25, 0, %s24
    %s27 = sadd.s32 1, %s18
    %s28 = scalar_select %p25, %s27, %s18
    %p29 = scmp.ge.s32.totalorder %s28, 2
    %s30 = scalar_select %p29, 0, %s28
    %s31 = ssub.s32 %s18, %s30
    %s32 = ssub.s32 %s19, %s26
    %s33 = sor.u32 %s31, %s32
    %p34 = scmp.eq.s32.totalorder %s33, 0
    %s36 = sadd.s32 %s35, 1
    %s37 = scalar_select %p34, %s35, %s36
    %p40 = pneg %p34
    %p41 = scmp.eq.s32.totalorder %s11, 1
    %p42 = por %p40, %p41
    %p43 = scmp.ne.s32.totalorder %s35, %s38
    %p44 = scmp.eq.s32.totalorder %s11, 0
    %p45 = por %p43, %p44
    %p46 = scmp.ne.s32.totalorder %s35, %s38
    %p47 = scmp.eq.s32.totalorder %s16, 1
    %p48 = por %p46, %p47
    %p49 = scmp.ne.s32.totalorder %s38, %s39
    %p50 = scmp.eq.s32.totalorder %s16, 0
    %p51 = por %p49, %p50
    %p52 = scmp.ne.s32.totalorder %s38, %s39
    %p53 = scmp.eq.s32.totalorder %s17, 1
    %p54 = por %p52, %p53
    %p56 = scmp.ne.s32.totalorder %s39, %s55
    %p57 = scmp.eq.s32.totalorder %s17, 0
    %p58 = por %p56, %p57
    %s60 = sadd.s32 %s59, 1
    %p63 = scmp.eq.s32.totalorder %s11, 1
    %p64 = scmp.ne.s32.totalorder %s59, %s61
    %p65 = scmp.eq.s32.totalorder %s11, 0
    %p66 = por %p64, %p65
    %p67 = scmp.ne.s32.totalorder %s59, %s61
    %p68 = scmp.eq.s32.totalorder %s16, 1
    %p69 = por %p67, %p68
    %p70 = scmp.ne.s32.totalorder %s61, %s62
    %p71 = scmp.eq.s32.totalorder %s16, 0
    %p72 = por %p70, %p71
    %p73 = scmp.ne.s32.totalorder %s61, %s62
    %p74 = scmp.eq.s32.totalorder %s17, 1
    %p75 = por %p73, %p74
    %p77 = scmp.ne.s32.totalorder %s62, %s76
    %p78 = scmp.eq.s32.totalorder %s17, 0
    %p79 = por %p77, %p78
    %s81 = sadd.s32 %s80, 1
    %p84 = scmp.eq.s32.totalorder %s11, 1
    %p85 = scmp.ne.s32.totalorder %s80, %s82
    %p86 = scmp.eq.s32.totalorder %s11, 0
    %p87 = por %p85, %p86
    %p88 = scmp.ne.s32.totalorder %s80, %s82
    %p89 = scmp.eq.s32.totalorder %s16, 1
    %p90 = por %p88, %p89
    %p91 = scmp.ne.s32.totalorder %s82, %s83
    %p92 = scmp.eq.s32.totalorder %s16, 0
    %p93 = por %p91, %p92
    %p94 = scmp.ne.s32.totalorder %s82, %s83
    %p95 = scmp.eq.s32.totalorder %s17, 1
    %p96 = por %p94, %p95
    %p98 = scmp.ne.s32.totalorder %s83, %s97
    %p99 = scmp.eq.s32.totalorder %s17, 0
    %p100 = por %p98, %p99
    %s102 = sadd.s32 %s101, 1
    %p105 = scmp.eq.s32.totalorder %s11, 1
    %p106 = scmp.ne.s32.totalorder %s101, %s103
    %p107 = scmp.eq.s32.totalorder %s11, 0
    %p108 = por %p106, %p107
    %p109 = scmp.ne.s32.totalorder %s101, %s103
    %p110 = scmp.eq.s32.totalorder %s16, 1
    %p111 = por %p109, %p110
    %p112 = scmp.ne.s32.totalorder %s103, %s104
    %p113 = scmp.eq.s32.totalorder %s16, 0
    %p114 = por %p112, %p113
    %p115 = scmp.ne.s32.totalorder %s103, %s104
    %p116 = scmp.eq.s32.totalorder %s17, 1
    %p117 = por %p115, %p116
    %p119 = scmp.ne.s32.totalorder %s104, %s118
    %p120 = scmp.eq.s32.totalorder %s17, 0
    %p121 = por %p119, %p120
    %s123 = sadd.s32 %s122, 1
    %p126 = scmp.eq.s32.totalorder %s11, 1
    %p127 = scmp.ne.s32.totalorder %s122, %s124
    %p128 = scmp.eq.s32.totalorder %s11, 0
    %p129 = por %p127, %p128
    %p130 = scmp.ne.s32.totalorder %s122, %s124
    %p131 = scmp.eq.s32.totalorder %s16, 1
    %p132 = por %p130, %p131
    %p133 = scmp.ne.s32.totalorder %s124, %s125
    %p134 = scmp.eq.s32.totalorder %s16, 0
    %p135 = por %p133, %p134
    %p136 = scmp.ne.s32.totalorder %s124, %s125
    %p137 = scmp.eq.s32.totalorder %s17, 1
    %p138 = por %p136, %p137
    %p140 = scmp.ne.s32.totalorder %s125, %s139
    %p141 = scmp.eq.s32.totalorder %s17, 0
    %p142 = por %p140, %p141
    %s143 = ssub.s32 %s18, %s30
    %s144 = ssub.s32 %s19, %s26
    %s145 = sor.u32 %s143, %s144
    %p146 = scmp.eq.s32.totalorder %s145, 0
    %s148 = sadd.s32 %s147, 1
    %s149 = scalar_select %p146, %s147, %s148
    %p152 = pneg %p146
    %p153 = scmp.eq.s32.totalorder %s11, 1
    %p154 = por %p152, %p153
    %p155 = scmp.ne.s32.totalorder %s147, %s150
    %p156 = scmp.eq.s32.totalorder %s11, 0
    %p157 = por %p155, %p156
    %p158 = scmp.ne.s32.totalorder %s147, %s150
    %p159 = scmp.eq.s32.totalorder %s16, 1
    %p160 = por %p158, %p159
    %p161 = scmp.ne.s32.totalorder %s150, %s151
    %p162 = scmp.eq.s32.totalorder %s16, 0
    %p163 = por %p161, %p162
    %p164 = scmp.ne.s32.totalorder %s150, %s151
    %p165 = scmp.eq.s32.totalorder %s17, 1
    %p166 = por %p164, %p165
    %p168 = scmp.ne.s32.totalorder %s151, %s167
    %p169 = scmp.eq.s32.totalorder %s17, 0
    %p170 = por %p168, %p169
    %p171 = scmp.le.s32.totalorder 1, %s11
    %p172 = scmp.lt.s32.totalorder %s11, 3
    %p173 = pnand %p171, %p172
    %p174 = pneg %p173
    // Predicated region
    $region9: #{tpu_custom_call.1} parent=5 // pred_check
      _
    $region10: #{tpu_custom_call.1} parent=5 // pred_check_branch
      %176 = sbr.rel (%p173) target = $region12
    $region11: #{tpu_custom_call.1} parent=5 // pred_region
      %s177 = ssub.s32 %s11, 1
      // Predicated region
      $region13: #{tpu_custom_call.1} parent=11 // pred_check
        %p178 = pneg %p72
      $region14: #{tpu_custom_call.1} parent=11 // pred_check_branch
        %180 = sbr.rel (%p178) target = $region16
      $region15: #{tpu_custom_call.1} parent=11 // pred_region
        _
      $region16: #{tpu_custom_call.1} parent=11 // pred_fallthru
        _
      // Predicated region
      $region17: #{tpu_custom_call.1} parent=11 // pred_check
        %p181 = pneg %p93
      $region18: #{tpu_custom_call.1} parent=11 // pred_check_branch
        %183 = sbr.rel (%p181) target = $region20
      $region19: #{tpu_custom_call.1} parent=11 // pred_region
        _
      $region20: #{tpu_custom_call.1} parent=11 // pred_fallthru
        _
      // Predicated region
      $region21: #{tpu_custom_call.1} parent=11 // pred_check
        %p184 = pneg %p114
      $region22: #{tpu_custom_call.1} parent=11 // pred_check_branch
        %186 = sbr.rel (%p184) target = $region24
      $region23: #{tpu_custom_call.1} parent=11 // pred_region
        _
      $region24: #{tpu_custom_call.1} parent=11 // pred_fallthru
        _
      // Predicated region
      $region25: #{tpu_custom_call.1} parent=11 // pred_check
        %p187 = pneg %p135
      $region26: #{tpu_custom_call.1} parent=11 // pred_check_branch
        %189 = sbr.rel (%p187) target = $region28
      $region27: #{tpu_custom_call.1} parent=11 // pred_region
        _
      $region28: #{tpu_custom_call.1} parent=11 // pred_fallthru
        _
    $region12: #{tpu_custom_call.1} parent=5 // pred_fallthru
      _
    %p190 = scmp.lt.s32.totalorder %s11, 2
    // Predicated region
    $region29: #{tpu_custom_call.1} parent=5 // pred_check
      %p191 = pneg %p190
    $region30: #{tpu_custom_call.1} parent=5 // pred_check_branch
      %193 = sbr.rel (%p191) target = $region32
    $region31: #{tpu_custom_call.1} parent=5 // pred_region
      // Predicated region
      $region33: #{tpu_custom_call.1} parent=31 // pred_check
        %p194 = pneg %p45
      $region34: #{tpu_custom_call.1} parent=31 // pred_check_branch
        %196 = sbr.rel (%p194) target = $region36
      $region35: #{tpu_custom_call.1} parent=31 // pred_region
        %s197 = smul.u32 32, %s19
        %p198 = scmp.lt.s32.totalorder %s18, 1
        %s199 = scalar_select %p198, %s18, 1
        %p200 = scmp.lt.s32.totalorder %s197, 31
        %s201 = scalar_select %p200, %s197, 31
        %s202 = smul.addr %s199, 32
        %s203 = sadd.s32 %s201, %s202
        %s204 = smul.addr %s203, 4
        %s205 = scalar_lea.vmem %s0, %s204
        %s206 = smul.u32 32, %s19
      $region36: #{tpu_custom_call.1} parent=31 // pred_fallthru
        _
    $region32: #{tpu_custom_call.1} parent=5 // pred_fallthru
      _
    %p207 = scmp.le.s32.totalorder 1, %s11
    %p208 = scmp.lt.s32.totalorder %s11, 3
    %p209 = pnand %p207, %p208
    %p210 = pneg %p209
    // Predicated region
    $region37: #{tpu_custom_call.1} parent=5 // pred_check
      _
    $region38: #{tpu_custom_call.1} parent=5 // pred_check_branch
      %212 = sbr.rel (%p209) target = $region40
    $region39: #{tpu_custom_call.1} parent=5 // pred_region
      %s213 = ssub.s32 %s11, 1
      %s214 = smul.u32 32, %s21
      %p215 = scmp.lt.s32.totalorder %s20, 1
      %s216 = scalar_select %p215, %s20, 1
      %p217 = scmp.lt.s32.totalorder %s214, 31
      %s218 = scalar_select %p217, %s214, 31
      %s219 = smul.addr %s216, 32
      %s220 = sadd.s32 %s218, %s219
      %s221 = smul.addr %s220, 4
      %s222 = scalar_lea.vmem %s0, %s221
      %p223 = pneg %p51
      %p224 = pneg %p48
      %p225 = pneg %p72
      %p226 = pneg %p69
      %p227 = pneg %p93
      %p228 = pneg %p90
      %p229 = pneg %p114
      %p230 = pneg %p111
      %p231 = pneg %p135
      %p232 = pneg %p132
      %p233 = pneg %p163
      %p234 = pneg %p160
      %s235 = smul.u32 32, %s21
      %p236 = scmp.lt.s32.totalorder %s20, 1
      %s237 = scalar_select %p236, %s20, 1
      %p238 = scmp.lt.s32.totalorder %s235, 31
      %s239 = scalar_select %p238, %s235, 31
      %s240 = smul.addr %s237, 32
      %s241 = sadd.s32 %s239, %s240
      %s242 = smul.addr %s241, 4
      %s243 = scalar_lea.vmem %s5, %s242
      %s244 = smul.u32 32, %s21
      %p245 = scmp.lt.s32.totalorder %s20, 1
      %s246 = scalar_select %p245, %s20, 1
      %p247 = scmp.lt.s32.totalorder %s244, 31
      %s248 = scalar_select %p247, %s244, 31
      %s249 = smul.addr %s246, 32
      %s250 = sadd.s32 %s248, %s249
      %s251 = smul.addr %s250, 4
      %s252 = scalar_lea.vmem %s0, %s251
      %s253 = smul.u32 32, %s21
      %s254 = smul.u32 32, %s21
      %p255 = scmp.lt.s32.totalorder %s20, 1
      %s256 = scalar_select %p255, %s20, 1
      %p257 = scmp.lt.s32.totalorder %s254, 31
      %s258 = scalar_select %p257, %s254, 31
      %s259 = smul.addr %s256, 32
      %s260 = sadd.s32 %s258, %s259
      %s261 = smul.addr %s260, 4
      %s262 = scalar_lea.vmem %s5, %s261
      %s263 = smul.u32 32, %s21
      %v265 = vld [vmem:[%s252] sm:$0xf]
      %v266 = vld [vmem:[%s252 + $0x4] sm:$0xf]
      %v267 = vld [vmem:[%s252 + $0x8] sm:$0xf]
      %v268 = vld [vmem:[%s252 + $0xc] sm:$0xf]
      %v269 = vld [vmem:[%s252 + $0x10] sm:$0xf]
      %v270 = vld [vmem:[%s252 + $0x14] sm:$0xf]
      %v271 = vld [vmem:[%s252 + $0x18] sm:$0xf]
      %v272 = vld [vmem:[%s252 + $0x1c] sm:$0xf]
      %v273 = vld [vmem:[%s252 + $0x20] sm:$0xf]
      %v274 = vld [vmem:[%s252 + $0x24] sm:$0xf]
      %v275 = vld [vmem:[%s252 + $0x28] sm:$0xf]
      %v276 = vld [vmem:[%s252 + $0x2c] sm:$0xf]
      %v277 = vld [vmem:[%s252 + $0x30] sm:$0xf]
      %v278 = vld [vmem:[%s252 + $0x34] sm:$0xf]
      %v279 = vld [vmem:[%s252 + $0x38] sm:$0xf]
      %v280 = vld [vmem:[%s252 + $0x3c] sm:$0xf]
      %v281 = vld [vmem:[%s252 + $0x40] sm:$0xf]
      %v282 = vld [vmem:[%s252 + $0x44] sm:$0xf]
      %v283 = vld [vmem:[%s252 + $0x48] sm:$0xf]
      %v284 = vld [vmem:[%s252 + $0x4c] sm:$0xf]
      %v285 = vld [vmem:[%s252 + $0x50] sm:$0xf]
      %v286 = vld [vmem:[%s252 + $0x54] sm:$0xf]
      %v287 = vld [vmem:[%s252 + $0x58] sm:$0xf]
      %v288 = vld [vmem:[%s252 + $0x5c] sm:$0xf]
      %v289 = vld [vmem:[%s252 + $0x60] sm:$0xf]
      %v290 = vld [vmem:[%s252 + $0x64] sm:$0xf]
      %v291 = vld [vmem:[%s252 + $0x68] sm:$0xf]
      %v292 = vld [vmem:[%s252 + $0x6c] sm:$0xf]
      %v293 = vld [vmem:[%s252 + $0x70] sm:$0xf]
      %v294 = vld [vmem:[%s252 + $0x74] sm:$0xf]
      %v295 = vld [vmem:[%s252 + $0x78] sm:$0xf]
      %v296 = vld [vmem:[%s252 + $0x7c] sm:$0xf]
      %v297 = vld [vmem:[%s1] sm:$0xff]
      %v298 = vld [vmem:[%s1 + $0x8] sm:$0xff]
      %v299 = vld [vmem:[%s1 + $0x10] sm:$0xff]
      %v300 = vld [vmem:[%s1 + $0x18] sm:$0xff]
      %v301 = vld [vmem:[%s1 + $0x20] sm:$0x33]
      %v302 = vld [vmem:[%s2] sm:$0x3]
      %v304 = vlaneseq
      %v305 = vshrl.u32 %v304, 7
      %v306 = vsub.s32 0, %v305
      %v307 = vrot.slane %v302, %v306
      %v308 = vlaneseq
      %v309 = vshrl.u32 %v308, 7
      %v310 = vsub.s32 1, %v309
      %v311 = vrot.slane %v302, %v310
      %v346 = vunpack.c.l.b16 %v265
      %v347 = vunpack.c.l.b16 %v266
      %v348 = vunpack.c.l.b16 %v267
      %v349 = vunpack.c.l.b16 %v268
      %v350 = vunpack.c.l.b16 %v269
      %v351 = vunpack.c.l.b16 %v270
      %v352 = vunpack.c.l.b16 %v271
      %v353 = vunpack.c.l.b16 %v272
      %v354 = vunpack.c.l.b16 %v273
      %v355 = vunpack.c.l.b16 %v274
      %v356 = vunpack.c.l.b16 %v275
      %v357 = vunpack.c.l.b16 %v276
      %v358 = vunpack.c.l.b16 %v277
      %v359 = vunpack.c.l.b16 %v278
      %v360 = vunpack.c.l.b16 %v279
      %v361 = vunpack.c.l.b16 %v280
      %v362 = vunpack.c.l.b16 %v281
      %v363 = vunpack.c.l.b16 %v282
      %v364 = vunpack.c.l.b16 %v283
      %v365 = vunpack.c.l.b16 %v284
      %v366 = vunpack.c.l.b16 %v285
      %v367 = vunpack.c.l.b16 %v286
      %v368 = vunpack.c.l.b16 %v287
      %v369 = vunpack.c.l.b16 %v288
      %v370 = vunpack.c.l.b16 %v289
      %v371 = vunpack.c.l.b16 %v290
      %v372 = vunpack.c.l.b16 %v291
      %v373 = vunpack.c.l.b16 %v292
      %v374 = vunpack.c.l.b16 %v293
      %v375 = vunpack.c.l.b16 %v294
      %v376 = vunpack.c.l.b16 %v295
      %v377 = vunpack.c.l.b16 %v296
      %v378 = vpack.c.b16 %v347, %v346
      %v379 = vpack.c.b16 %v349, %v348
      %v380 = vpack.c.b16 %v351, %v350
      %v381 = vpack.c.b16 %v353, %v352
      %v382 = vpack.c.b16 %v355, %v354
      %v383 = vpack.c.b16 %v357, %v356
      %v384 = vpack.c.b16 %v359, %v358
      %v385 = vpack.c.b16 %v361, %v360
      %v386 = vpack.c.b16 %v363, %v362
      %v387 = vpack.c.b16 %v365, %v364
      %v388 = vpack.c.b16 %v367, %v366
      %v389 = vpack.c.b16 %v369, %v368
      %v390 = vpack.c.b16 %v371, %v370
      %v391 = vpack.c.b16 %v373, %v372
      %v392 = vpack.c.b16 %v375, %v374
      %v393 = vpack.c.b16 %v377, %v376
      %v399 = vunpack.c.l.b16 %v297
      %v400 = vunpack.c.h.b16 %v297
      %v401 = vunpack.c.l.b16 %v298
      %v402 = vunpack.c.h.b16 %v298
      %v403 = vunpack.c.l.b16 %v299
      %v404 = vunpack.c.h.b16 %v299
      %v405 = vunpack.c.l.b16 %v300
      %v406 = vunpack.c.h.b16 %v300
      %v407 = vunpack.c.l.b16 %v301
      %v408 = vunpack.c.h.b16 %v301
      %v409 = vpack.c.b16 %v401, %v399
      %v410 = vpack.c.b16 %v402, %v400
      %v411 = vpack.c.b16 %v405, %v403
      %v412 = vpack.c.b16 %v406, %v404
      %v413 = vpack.c.b16 %v407, %v407
      %v414 = vpack.c.b16 %v408, %v408
      %vm419 = vcmask 293888
      %v421 = vsel %vm419, %v378, 0
      %v424 = vsel %vm419, %v379, 0
      %v427 = vsel %vm419, %v380, 0
      %v430 = vsel %vm419, %v381, 0
      %v433 = vsel %vm419, %v382, 0
      %v436 = vsel %vm419, %v383, 0
      %v439 = vsel %vm419, %v384, 0
      %v442 = vsel %vm419, %v385, 0
      %v445 = vsel %vm419, %v386, 0
      %v448 = vsel %vm419, %v387, 0
      %v451 = vsel %vm419, %v388, 0
      %v454 = vsel %vm419, %v389, 0
      %v457 = vsel %vm419, %v390, 0
      %v460 = vsel %vm419, %v391, 0
      %v463 = vsel %vm419, %v392, 0
      %v466 = vsel %vm419, %v393, 0
      %vm468 = vcmask 1041408
      %v470 = vsel %vm468, %v413, 0
      %v473 = vsel %vm468, %v414, 0
      %475 = vmatprep.subr.bf16.mxu0 %v410
      %476 = vmatpush1.bf16.msra.mxu0 %v409
      %477 = vmatprep.subr.bf16.mxu0 %v412
      %478 = vmatpush1.bf16.msra.mxu0 %v411
      %479 = vmatprep.subr.bf16.mxu0 %v473
      %480 = vmatpush1.bf16.msra.mxu0 %v470
      %481 = vmatprep.subr.bf16.mxu0 0
      %482 = vmatpush1.bf16.msra.mxu0 0
      %483 = vmatprep.subr.bf16.mxu0 0
      %484 = vmatpush1.bf16.msra.mxu0 0
      %485 = vmatprep.subr.bf16.mxu0 0
      %486 = vmatpush1.bf16.msra.mxu0 0
      %487 = vmatprep.subr.bf16.mxu0 0
      %488 = vmatpush1.bf16.msra.mxu0 0
      %489 = vmatprep.subr.bf16.mxu0 0
      %490 = vmatpush1.bf16.msra.mxu0 0
      %491 = vmatprep.subr.bf16.mxu0 0
      %492 = vmatpush1.bf16.msra.mxu0 0
      %493 = vmatprep.subr.bf16.mxu0 0
      %494 = vmatpush1.bf16.msra.mxu0 0
      %495 = vmatprep.subr.bf16.mxu0 0
      %496 = vmatpush1.bf16.msra.mxu0 0
      %497 = vmatprep.subr.bf16.mxu0 0
      %498 = vmatpush1.bf16.msra.mxu0 0
      %499 = vmatprep.subr.bf16.mxu0 0
      %500 = vmatpush1.bf16.msra.mxu0 0
      %501 = vmatprep.subr.bf16.mxu0 0
      %502 = vmatpush1.bf16.msra.mxu0 0
      %503 = vmatprep.subr.bf16.mxu0 0
      %504 = vmatpush1.bf16.msra.mxu0 0
      %505 = vmatprep.subr.bf16.mxu0 0
      %506 = vmatpush1.bf16.msra.mxu0 0
      %507 = vmatprep.mubr.bf16.mxu0 0
      %508 = vmatmul.mubr.bf16.gmra.mrb[0].mxu0 %v421
      %v509 = vpop.f32.mrb[0].mxu0
      %v510 = vadd.f32 %v307, %v509
      %v511 = vpop.f32.mrb[0].mxu0
      %v512 = vadd.f32 %v311, %v511
      %v513 = vpop.f32.mrb[0].mxu0
      %v514 = vadd.f32 %v307, %v513
      %v515 = vpop.f32.mrb[0].mxu0
      %v516 = vadd.f32 %v311, %v515
      %517 = vmatprep.mubr.bf16.mxu0 0
      %518 = vmatmul.mubr.bf16.gmra.mrb[0].mxu0 %v424
      %v519 = vpop.f32.mrb[0].mxu0
      %v520 = vadd.f32 %v307, %v519
      %v521 = vpop.f32.mrb[0].mxu0
      %v522 = vadd.f32 %v311, %v521
      %v523 = vpop.f32.mrb[0].mxu0
      %v524 = vadd.f32 %v307, %v523
      %v525 = vpop.f32.mrb[0].mxu0
      %v526 = vadd.f32 %v311, %v525
      %527 = vmatprep.mubr.bf16.mxu0 0
      %528 = vmatmul.mubr.bf16.gmra.mrb[0].mxu0 %v427
      %v529 = vpop.f32.mrb[0].mxu0
      %v530 = vadd.f32 %v307, %v529
      %v531 = vpop.f32.mrb[0].mxu0
      %v532 = vadd.f32 %v311, %v531
      %v533 = vpop.f32.mrb[0].mxu0
      %v534 = vadd.f32 %v307, %v533
      %v535 = vpop.f32.mrb[0].mxu0
      %v536 = vadd.f32 %v311, %v535
      %537 = vmatprep.mubr.bf16.mxu0 0
      %538 = vmatmul.mubr.bf16.gmra.mrb[0].mxu0 %v430
      %v539 = vpop.f32.mrb[0].mxu0
      %v540 = vadd.f32 %v307, %v539
      %v541 = vpop.f32.mrb[0].mxu0
      %v542 = vadd.f32 %v311, %v541
      %v543 = vpop.f32.mrb[0].mxu0
      %v544 = vadd.f32 %v307, %v543
      %v545 = vpop.f32.mrb[0].mxu0
      %v546 = vadd.f32 %v311, %v545
      %547 = vmatprep.mubr.bf16.mxu0 0
      %548 = vmatmul.mubr.bf16.gmra.mrb[0].mxu0 %v433
      %v549 = vpop.f32.mrb[0].mxu0
      %v550 = vadd.f32 %v307, %v549
      %v551 = vpop.f32.mrb[0].mxu0
      %v552 = vadd.f32 %v311, %v551
      %v553 = vpop.f32.mrb[0].mxu0
      %v554 = vadd.f32 %v307, %v553
      %v555 = vpop.f32.mrb[0].mxu0
      %v556 = vadd.f32 %v311, %v555
      %557 = vmatprep.mubr.bf16.mxu0 0
      %558 = vmatmul.mubr.bf16.gmra.mrb[0].mxu0 %v436
      %v559 = vpop.f32.mrb[0].mxu0
      %v560 = vadd.f32 %v307, %v559
      %v561 = vpop.f32.mrb[0].mxu0
      %v562 = vadd.f32 %v311, %v561
      %v563 = vpop.f32.mrb[0].mxu0
      %v564 = vadd.f32 %v307, %v563
      %v565 = vpop.f32.mrb[0].mxu0
      %v566 = vadd.f32 %v311, %v565
      %567 = vmatprep.mubr.bf16.mxu0 0
      %568 = vmatmul.mubr.bf16.gmra.mrb[0].mxu0 %v439
      %v569 = vpop.f32.mrb[0].mxu0
      %v570 = vadd.f32 %v307, %v569
      %v571 = vpop.f32.mrb[0].mxu0
      %v572 = vadd.f32 %v311, %v571
      %v573 = vpop.f32.mrb[0].mxu0
      %v574 = vadd.f32 %v307, %v573
      %v575 = vpop.f32.mrb[0].mxu0
      %v576 = vadd.f32 %v311, %v575
      %577 = vmatprep.mubr.bf16.mxu0 0
      %578 = vmatmul.mubr.bf16.gmra.mrb[0].mxu0 %v442
      %v579 = vpop.f32.mrb[0].mxu0
      %v580 = vadd.f32 %v307, %v579
      %v581 = vpop.f32.mrb[0].mxu0
      %v582 = vadd.f32 %v311, %v581
      %v583 = vpop.f32.mrb[0].mxu0
      %v584 = vadd.f32 %v307, %v583
      %v585 = vpop.f32.mrb[0].mxu0
      %v586 = vadd.f32 %v311, %v585
      %587 = vmatprep.mubr.bf16.mxu0 0
      %588 = vmatmul.mubr.bf16.gmra.mrb[0].mxu0 %v445
      %v589 = vpop.f32.mrb[0].mxu0
      %v590 = vadd.f32 %v307, %v589
      %v591 = vpop.f32.mrb[0].mxu0
      %v592 = vadd.f32 %v311, %v591
      %v593 = vpop.f32.mrb[0].mxu0
      %v594 = vadd.f32 %v307, %v593
      %v595 = vpop.f32.mrb[0].mxu0
      %v596 = vadd.f32 %v311, %v595
      %597 = vmatprep.mubr.bf16.mxu0 0
      %598 = vmatmul.mubr.bf16.gmra.mrb[0].mxu0 %v448
      %v599 = vpop.f32.mrb[0].mxu0
      %v600 = vadd.f32 %v307, %v599
      %v601 = vpop.f32.mrb[0].mxu0
      %v602 = vadd.f32 %v311, %v601
      %v603 = vpop.f32.mrb[0].mxu0
      %v604 = vadd.f32 %v307, %v603
      %v605 = vpop.f32.mrb[0].mxu0
      %v606 = vadd.f32 %v311, %v605
      %607 = vmatprep.mubr.bf16.mxu0 0
      %608 = vmatmul.mubr.bf16.gmra.mrb[0].mxu0 %v451
      %v609 = vpop.f32.mrb[0].mxu0
      %v610 = vadd.f32 %v307, %v609
      %v611 = vpop.f32.mrb[0].mxu0
      %v612 = vadd.f32 %v311, %v611
      %v613 = vpop.f32.mrb[0].mxu0
      %v614 = vadd.f32 %v307, %v613
      %v615 = vpop.f32.mrb[0].mxu0
      %v616 = vadd.f32 %v311, %v615
      %617 = vmatprep.mubr.bf16.mxu0 0
      %618 = vmatmul.mubr.bf16.gmra.mrb[0].mxu0 %v454
      %v619 = vpop.f32.mrb[0].mxu0
      %v620 = vadd.f32 %v307, %v619
      %v621 = vpop.f32.mrb[0].mxu0
      %v622 = vadd.f32 %v311, %v621
      %v623 = vpop.f32.mrb[0].mxu0
      %v624 = vadd.f32 %v307, %v623
      %v625 = vpop.f32.mrb[0].mxu0
      %v626 = vadd.f32 %v311, %v625
      %627 = vmatprep.mubr.bf16.mxu0 0
      %628 = vmatmul.mubr.bf16.gmra.mrb[0].mxu0 %v457
      %v629 = vpop.f32.mrb[0].mxu0
      %v630 = vadd.f32 %v307, %v629
      %v631 = vpop.f32.mrb[0].mxu0
      %v632 = vadd.f32 %v311, %v631
      %v633 = vpop.f32.mrb[0].mxu0
      %v634 = vadd.f32 %v307, %v633
      %v635 = vpop.f32.mrb[0].mxu0
      %v636 = vadd.f32 %v311, %v635
      %637 = vmatprep.mubr.bf16.mxu0 0
      %638 = vmatmul.mubr.bf16.gmra.mrb[0].mxu0 %v460
      %v639 = vpop.f32.mrb[0].mxu0
      %v640 = vadd.f32 %v307, %v639
      %v641 = vpop.f32.mrb[0].mxu0
      %v642 = vadd.f32 %v311, %v641
      %v643 = vpop.f32.mrb[0].mxu0
      %v644 = vadd.f32 %v307, %v643
      %v645 = vpop.f32.mrb[0].mxu0
      %v646 = vadd.f32 %v311, %v645
      %647 = vmatprep.mubr.bf16.mxu0 0
      %648 = vmatmul.mubr.bf16.gmra.mrb[0].mxu0 %v463
      %v649 = vpop.f32.mrb[0].mxu0
      %v650 = vadd.f32 %v307, %v649
      %v651 = vpop.f32.mrb[0].mxu0
      %v652 = vadd.f32 %v311, %v651
      %v653 = vpop.f32.mrb[0].mxu0
      %v654 = vadd.f32 %v307, %v653
      %v655 = vpop.f32.mrb[0].mxu0
      %v656 = vadd.f32 %v311, %v655
      %657 = vmatprep.mubr.bf16.mxu0 0
      %658 = vmatmul.mubr.bf16.gmra.mrb[0].mxu0 %v466
      %v659 = vpop.f32.mrb[0].mxu0
      %v660 = vadd.f32 %v307, %v659
      %v661 = vpop.f32.mrb[0].mxu0
      %v662 = vadd.f32 %v311, %v661
      %v663 = vpop.f32.mrb[0].mxu0
      %v664 = vadd.f32 %v307, %v663
      %v665 = vpop.f32.mrb[0].mxu0
      %v666 = vadd.f32 %v311, %v665
      %667 = vdwg.mxu0
      %v668 = vmax.f32 %v510, 0.0
      %v669 = vmax.f32 %v512, 0.0
      %v670 = vmax.f32 %v514, 0.0
      %v671 = vmax.f32 %v516, 0.0
      %v672 = vmax.f32 %v520, 0.0
      %v673 = vmax.f32 %v522, 0.0
      %v674 = vmax.f32 %v524, 0.0
      %v675 = vmax.f32 %v526, 0.0
      %v676 = vmax.f32 %v530, 0.0
      %v677 = vmax.f32 %v532, 0.0
      %v678 = vmax.f32 %v534, 0.0
      %v679 = vmax.f32 %v536, 0.0
      %v680 = vmax.f32 %v540, 0.0
      %v681 = vmax.f32 %v542, 0.0
      %v682 = vmax.f32 %v544, 0.0
      %v683 = vmax.f32 %v546, 0.0
      %v684 = vmax.f32 %v550, 0.0
      %v685 = vmax.f32 %v552, 0.0
      %v686 = vmax.f32 %v554, 0.0
      %v687 = vmax.f32 %v556, 0.0
      %v688 = vmax.f32 %v560, 0.0
      %v689 = vmax.f32 %v562, 0.0
      %v690 = vmax.f32 %v564, 0.0
      %v691 = vmax.f32 %v566, 0.0
      %v692 = vmax.f32 %v570, 0.0
      %v693 = vmax.f32 %v572, 0.0
      %v694 = vmax.f32 %v574, 0.0
      %v695 = vmax.f32 %v576, 0.0
      %v696 = vmax.f32 %v580, 0.0
      %v697 = vmax.f32 %v582, 0.0
      %v698 = vmax.f32 %v584, 0.0
      %v699 = vmax.f32 %v586, 0.0
      %v700 = vmax.f32 %v590, 0.0
      %v701 = vmax.f32 %v592, 0.0
      %v702 = vmax.f32 %v594, 0.0
      %v703 = vmax.f32 %v596, 0.0
      %v704 = vmax.f32 %v600, 0.0
      %v705 = vmax.f32 %v602, 0.0
      %v706 = vmax.f32 %v604, 0.0
      %v707 = vmax.f32 %v606, 0.0
      %v708 = vmax.f32 %v610, 0.0
      %v709 = vmax.f32 %v612, 0.0
      %v710 = vmax.f32 %v614, 0.0
      %v711 = vmax.f32 %v616, 0.0
      %v712 = vmax.f32 %v620, 0.0
      %v713 = vmax.f32 %v622, 0.0
      %v714 = vmax.f32 %v624, 0.0
      %v715 = vmax.f32 %v626, 0.0
      %v716 = vmax.f32 %v630, 0.0
      %v717 = vmax.f32 %v632, 0.0
      %v718 = vmax.f32 %v634, 0.0
      %v719 = vmax.f32 %v636, 0.0
      %v720 = vmax.f32 %v640, 0.0
      %v721 = vmax.f32 %v642, 0.0
      %v722 = vmax.f32 %v644, 0.0
      %v723 = vmax.f32 %v646, 0.0
      %v724 = vmax.f32 %v650, 0.0
      %v725 = vmax.f32 %v652, 0.0
      %v726 = vmax.f32 %v654, 0.0
      %v727 = vmax.f32 %v656, 0.0
      %v728 = vmax.f32 %v660, 0.0
      %v729 = vmax.f32 %v662, 0.0
      %v730 = vmax.f32 %v664, 0.0
      %v731 = vmax.f32 %v666, 0.0
      %v732 = vpack.c.bf16 %v670, %v668
      %v733 = vpack.c.bf16 %v671, %v669
      %v734 = vpack.c.bf16 %v674, %v672
      %v735 = vpack.c.bf16 %v675, %v673
      %v736 = vpack.c.bf16 %v678, %v676
      %v737 = vpack.c.bf16 %v679, %v677
      %v738 = vpack.c.bf16 %v682, %v680
      %v739 = vpack.c.bf16 %v683, %v681
      %v740 = vpack.c.bf16 %v686, %v684
      %v741 = vpack.c.bf16 %v687, %v685
      %v742 = vpack.c.bf16 %v690, %v688
      %v743 = vpack.c.bf16 %v691, %v689
      %v744 = vpack.c.bf16 %v694, %v692
      %v745 = vpack.c.bf16 %v695, %v693
      %v746 = vpack.c.bf16 %v698, %v696
      %v747 = vpack.c.bf16 %v699, %v697
      %v748 = vpack.c.bf16 %v702, %v700
      %v749 = vpack.c.bf16 %v703, %v701
      %v750 = vpack.c.bf16 %v706, %v704
      %v751 = vpack.c.bf16 %v707, %v705
      %v752 = vpack.c.bf16 %v710, %v708
      %v753 = vpack.c.bf16 %v711, %v709
      %v754 = vpack.c.bf16 %v714, %v712
      %v755 = vpack.c.bf16 %v715, %v713
      %v756 = vpack.c.bf16 %v718, %v716
      %v757 = vpack.c.bf16 %v719, %v717
      %v758 = vpack.c.bf16 %v722, %v720
      %v759 = vpack.c.bf16 %v723, %v721
      %v760 = vpack.c.bf16 %v726, %v724
      %v761 = vpack.c.bf16 %v727, %v725
      %v762 = vpack.c.bf16 %v730, %v728
      %v763 = vpack.c.bf16 %v731, %v729
      %v764 = vld [vmem:[%s3] sm:$0xf]
      %v765 = vld [vmem:[%s3 + $0x4] sm:$0xf]
      %v766 = vld [vmem:[%s3 + $0x8] sm:$0xf]
      %v767 = vld [vmem:[%s3 + $0xc] sm:$0xf]
      %v768 = vld [vmem:[%s3 + $0x10] sm:$0xf]
      %v769 = vld [vmem:[%s3 + $0x14] sm:$0xf]
      %v770 = vld [vmem:[%s3 + $0x18] sm:$0xf]
      %v771 = vld [vmem:[%s3 + $0x1c] sm:$0xf]
      %v772 = vld [vmem:[%s3 + $0x20] sm:$0xf]
      %v773 = vld [vmem:[%s3 + $0x24] sm:$0xf]
      %v774 = vld [vmem:[%s3 + $0x28] sm:$0xf]
      %v775 = vld [vmem:[%s3 + $0x2c] sm:$0xf]
      %v776 = vld [vmem:[%s3 + $0x30] sm:$0xf]
      %v777 = vld [vmem:[%s3 + $0x34] sm:$0xf]
      %v778 = vld [vmem:[%s3 + $0x38] sm:$0xf]
      %v779 = vld [vmem:[%s3 + $0x3c] sm:$0xf]
      %v780 = vld [vmem:[%s3 + $0x40] sm:$0xf]
      %v781 = vld [vmem:[%s3 + $0x44] sm:$0xf]
      %v782 = vld [vmem:[%s3 + $0x48] sm:$0xf]
      %v783 = vld [vmem:[%s3 + $0x4c] sm:$0xf]
      %v784 = vld [vmem:[%s3 + $0x50] sm:$0xf]
      %v785 = vld [vmem:[%s3 + $0x54] sm:$0xf]
      %v786 = vld [vmem:[%s3 + $0x58] sm:$0xf]
      %v787 = vld [vmem:[%s3 + $0x5c] sm:$0xf]
      %v788 = vld [vmem:[%s3 + $0x60] sm:$0xf]
      %v789 = vld [vmem:[%s3 + $0x64] sm:$0xf]
      %v790 = vld [vmem:[%s3 + $0x68] sm:$0xf]
      %v791 = vld [vmem:[%s3 + $0x6c] sm:$0xf]
      %v792 = vld [vmem:[%s3 + $0x70] sm:$0xf]
      %v793 = vld [vmem:[%s3 + $0x74] sm:$0xf]
      %v794 = vld [vmem:[%s3 + $0x78] sm:$0xf]
      %v795 = vld [vmem:[%s3 + $0x7c] sm:$0xf]
      %v796 = vld [vmem:[%s4] sm:$0x1]
      %v798 = vlaneseq
      %v799 = vshrl.u32 %v798, 7
      %v800 = vsub.s32 0, %v799
      %v801 = vrot.slane %v796, %v800
      %v835 = vunpack.c.l.b16 %v764
      %v836 = vunpack.c.l.b16 %v765
      %v837 = vunpack.c.l.b16 %v766
      %v838 = vunpack.c.l.b16 %v767
      %v839 = vunpack.c.l.b16 %v768
      %v840 = vunpack.c.l.b16 %v769
      %v841 = vunpack.c.l.b16 %v770
      %v842 = vunpack.c.l.b16 %v771
      %v843 = vunpack.c.l.b16 %v772
      %v844 = vunpack.c.l.b16 %v773
      %v845 = vunpack.c.l.b16 %v774
      %v846 = vunpack.c.l.b16 %v775
      %v847 = vunpack.c.l.b16 %v776
      %v848 = vunpack.c.l.b16 %v777
      %v849 = vunpack.c.l.b16 %v778
      %v850 = vunpack.c.l.b16 %v779
      %v851 = vunpack.c.l.b16 %v780
      %v852 = vunpack.c.l.b16 %v781
      %v853 = vunpack.c.l.b16 %v782
      %v854 = vunpack.c.l.b16 %v783
      %v855 = vunpack.c.l.b16 %v784
      %v856 = vunpack.c.l.b16 %v785
      %v857 = vunpack.c.l.b16 %v786
      %v858 = vunpack.c.l.b16 %v787
      %v859 = vunpack.c.l.b16 %v788
      %v860 = vunpack.c.l.b16 %v789
      %v861 = vunpack.c.l.b16 %v790
      %v862 = vunpack.c.l.b16 %v791
      %v863 = vunpack.c.l.b16 %v792
      %v864 = vunpack.c.l.b16 %v793
      %v865 = vunpack.c.l.b16 %v794
      %v866 = vunpack.c.l.b16 %v795
      %v867 = vpack.c.b16 %v836, %v835
      %v868 = vpack.c.b16 %v838, %v837
      %v869 = vpack.c.b16 %v840, %v839
      %v870 = vpack.c.b16 %v842, %v841
      %v871 = vpack.c.b16 %v844, %v843
      %v872 = vpack.c.b16 %v846, %v845
      %v873 = vpack.c.b16 %v848, %v847
      %v874 = vpack.c.b16 %v850, %v849
      %v875 = vpack.c.b16 %v852, %v851
      %v876 = vpack.c.b16 %v854, %v853
      %v877 = vpack.c.b16 %v856, %v855
      %v878 = vpack.c.b16 %v858, %v857
      %v879 = vpack.c.b16 %v860, %v859
      %v880 = vpack.c.b16 %v862, %v861
      %v881 = vpack.c.b16 %v864, %v863
      %v882 = vpack.c.b16 %v866, %v865
      %899 = vmatprep.subr.bf16.mxu0 0
      %900 = vmatpush1.bf16.msra.mxu0 %v867
      %901 = vmatprep.subr.bf16.mxu0 0
      %902 = vmatpush1.bf16.msra.mxu0 %v868
      %903 = vmatprep.subr.bf16.mxu0 0
      %904 = vmatpush1.bf16.msra.mxu0 %v869
      %905 = vmatprep.subr.bf16.mxu0 0
      %906 = vmatpush1.bf16.msra.mxu0 %v870
      %907 = vmatprep.subr.bf16.mxu0 0
      %908 = vmatpush1.bf16.msra.mxu0 %v871
      %909 = vmatprep.subr.bf16.mxu0 0
      %910 = vmatpush1.bf16.msra.mxu0 %v872
      %911 = vmatprep.subr.bf16.mxu0 0
      %912 = vmatpush1.bf16.msra.mxu0 %v873
      %913 = vmatprep.subr.bf16.mxu0 0
      %914 = vmatpush1.bf16.msra.mxu0 %v874
      %915 = vmatprep.subr.bf16.mxu0 0
      %916 = vmatpush1.bf16.msra.mxu0 %v875
      %917 = vmatprep.subr.bf16.mxu0 0
      %918 = vmatpush1.bf16.msra.mxu0 %v876
      %919 = vmatprep.subr.bf16.mxu0 0
      %920 = vmatpush1.bf16.msra.mxu0 %v877
      %921 = vmatprep.subr.bf16.mxu0 0
      %922 = vmatpush1.bf16.msra.mxu0 %v878
      %923 = vmatprep.subr.bf16.mxu0 0
      %924 = vmatpush1.bf16.msra.mxu0 %v879
      %925 = vmatprep.subr.bf16.mxu0 0
      %926 = vmatpush1.bf16.msra.mxu0 %v880
      %927 = vmatprep.subr.bf16.mxu0 0
      %928 = vmatpush1.bf16.msra.mxu0 %v881
      %929 = vmatprep.subr.bf16.mxu0 0
      %930 = vmatpush1.bf16.msra.mxu0 %v882
      %931 = vmatprep.mubr.bf16.mxu0 %v733
      %932 = vmatmul.mubr.bf16.gmra.mrb[0].mxu0 %v732
      %v933 = vpop.f32.mrb[0].mxu0
      %v934 = vadd.f32 %v801, %v933
      %v935 = vpop.f32.mrb[0].mxu0
      %v936 = vpop.f32.mrb[0].mxu0
      %v937 = vadd.f32 %v801, %v936
      %v938 = vpop.f32.mrb[0].mxu0
      %939 = vmatprep.mubr.bf16.mxu0 %v735
      %940 = vmatmul.mubr.bf16.gmra.mrb[0].mxu0 %v734
      %v941 = vpop.f32.mrb[0].mxu0
      %v942 = vadd.f32 %v801, %v941
      %v943 = vpop.f32.mrb[0].mxu0
      %v944 = vpop.f32.mrb[0].mxu0
      %v945 = vadd.f32 %v801, %v944
      %v946 = vpop.f32.mrb[0].mxu0
      %947 = vmatprep.mubr.bf16.mxu0 %v737
      %948 = vmatmul.mubr.bf16.gmra.mrb[0].mxu0 %v736
      %v949 = vpop.f32.mrb[0].mxu0
      %v950 = vadd.f32 %v801, %v949
      %v951 = vpop.f32.mrb[0].mxu0
      %v952 = vpop.f32.mrb[0].mxu0
      %v953 = vadd.f32 %v801, %v952
      %v954 = vpop.f32.mrb[0].mxu0
      %955 = vmatprep.mubr.bf16.mxu0 %v739
      %956 = vmatmul.mubr.bf16.gmra.mrb[0].mxu0 %v738
      %v957 = vpop.f32.mrb[0].mxu0
      %v958 = vadd.f32 %v801, %v957
      %v959 = vpop.f32.mrb[0].mxu0
      %v960 = vpop.f32.mrb[0].mxu0
      %v961 = vadd.f32 %v801, %v960
      %v962 = vpop.f32.mrb[0].mxu0
      %963 = vmatprep.mubr.bf16.mxu0 %v741
      %964 = vmatmul.mubr.bf16.gmra.mrb[0].mxu0 %v740
      %v965 = vpop.f32.mrb[0].mxu0
      %v966 = vadd.f32 %v801, %v965
      %v967 = vpop.f32.mrb[0].mxu0
      %v968 = vpop.f32.mrb[0].mxu0
      %v969 = vadd.f32 %v801, %v968
      %v970 = vpop.f32.mrb[0].mxu0
      %971 = vmatprep.mubr.bf16.mxu0 %v743
      %972 = vmatmul.mubr.bf16.gmra.mrb[0].mxu0 %v742
      %v973 = vpop.f32.mrb[0].mxu0
      %v974 = vadd.f32 %v801, %v973
      %v975 = vpop.f32.mrb[0].mxu0
      %v976 = vpop.f32.mrb[0].mxu0
      %v977 = vadd.f32 %v801, %v976
      %v978 = vpop.f32.mrb[0].mxu0
      %979 = vmatprep.mubr.bf16.mxu0 %v745
      %980 = vmatmul.mubr.bf16.gmra.mrb[0].mxu0 %v744
      %v981 = vpop.f32.mrb[0].mxu0
      %v982 = vadd.f32 %v801, %v981
      %v983 = vpop.f32.mrb[0].mxu0
      %v984 = vpop.f32.mrb[0].mxu0
      %v985 = vadd.f32 %v801, %v984
      %v986 = vpop.f32.mrb[0].mxu0
      %987 = vmatprep.mubr.bf16.mxu0 %v747
      %988 = vmatmul.mubr.bf16.gmra.mrb[0].mxu0 %v746
      %v989 = vpop.f32.mrb[0].mxu0
      %v990 = vadd.f32 %v801, %v989
      %v991 = vpop.f32.mrb[0].mxu0
      %v992 = vpop.f32.mrb[0].mxu0
      %v993 = vadd.f32 %v801, %v992
      %v994 = vpop.f32.mrb[0].mxu0
      %995 = vmatprep.mubr.bf16.mxu0 %v749
      %996 = vmatmul.mubr.bf16.gmra.mrb[0].mxu0 %v748
      %v997 = vpop.f32.mrb[0].mxu0
      %v998 = vadd.f32 %v801, %v997
      %v999 = vpop.f32.mrb[0].mxu0
      %v1000 = vpop.f32.mrb[0].mxu0
      %v1001 = vadd.f32 %v801, %v1000
      %v1002 = vpop.f32.mrb[0].mxu0
      %1003 = vmatprep.mubr.bf16.mxu0 %v751
      %1004 = vmatmul.mubr.bf16.gmra.mrb[0].mxu0 %v750
      %v1005 = vpop.f32.mrb[0].mxu0
      %v1006 = vadd.f32 %v801, %v1005
      %v1007 = vpop.f32.mrb[0].mxu0
      %v1008 = vpop.f32.mrb[0].mxu0
      %v1009 = vadd.f32 %v801, %v1008
      %v1010 = vpop.f32.mrb[0].mxu0
      %1011 = vmatprep.mubr.bf16.mxu0 %v753
      %1012 = vmatmul.mubr.bf16.gmra.mrb[0].mxu0 %v752
      %v1013 = vpop.f32.mrb[0].mxu0
      %v1014 = vadd.f32 %v801, %v1013
      %v1015 = vpop.f32.mrb[0].mxu0
      %v1016 = vpop.f32.mrb[0].mxu0
      %v1017 = vadd.f32 %v801, %v1016
      %v1018 = vpop.f32.mrb[0].mxu0
      %1019 = vmatprep.mubr.bf16.mxu0 %v755
      %1020 = vmatmul.mubr.bf16.gmra.mrb[0].mxu0 %v754
      %v1021 = vpop.f32.mrb[0].mxu0
      %v1022 = vadd.f32 %v801, %v1021
      %v1023 = vpop.f32.mrb[0].mxu0
      %v1024 = vpop.f32.mrb[0].mxu0
      %v1025 = vadd.f32 %v801, %v1024
      %v1026 = vpop.f32.mrb[0].mxu0
      %1027 = vmatprep.mubr.bf16.mxu0 %v757
      %1028 = vmatmul.mubr.bf16.gmra.mrb[0].mxu0 %v756
      %v1029 = vpop.f32.mrb[0].mxu0
      %v1030 = vadd.f32 %v801, %v1029
      %v1031 = vpop.f32.mrb[0].mxu0
      %v1032 = vpop.f32.mrb[0].mxu0
      %v1033 = vadd.f32 %v801, %v1032
      %v1034 = vpop.f32.mrb[0].mxu0
      %1035 = vmatprep.mubr.bf16.mxu0 %v759
      %1036 = vmatmul.mubr.bf16.gmra.mrb[0].mxu0 %v758
      %v1037 = vpop.f32.mrb[0].mxu0
      %v1038 = vadd.f32 %v801, %v1037
      %v1039 = vpop.f32.mrb[0].mxu0
      %v1040 = vpop.f32.mrb[0].mxu0
      %v1041 = vadd.f32 %v801, %v1040
      %v1042 = vpop.f32.mrb[0].mxu0
      %1043 = vmatprep.mubr.bf16.mxu0 %v761
      %1044 = vmatmul.mubr.bf16.gmra.mrb[0].mxu0 %v760
      %v1045 = vpop.f32.mrb[0].mxu0
      %v1046 = vadd.f32 %v801, %v1045
      %v1047 = vpop.f32.mrb[0].mxu0
      %v1048 = vpop.f32.mrb[0].mxu0
      %v1049 = vadd.f32 %v801, %v1048
      %v1050 = vpop.f32.mrb[0].mxu0
      %1051 = vmatprep.mubr.bf16.mxu0 %v763
      %1052 = vmatmul.mubr.bf16.gmra.mrb[0].mxu0 %v762
      %v1053 = vpop.f32.mrb[0].mxu0
      %v1054 = vadd.f32 %v801, %v1053
      %v1055 = vpop.f32.mrb[0].mxu0
      %v1056 = vpop.f32.mrb[0].mxu0
      %v1057 = vadd.f32 %v801, %v1056
      %v1058 = vpop.f32.mrb[0].mxu0
      %1059 = vdwg.mxu0
      %v1060 = vpack.c.bf16 %v937, %v934
      %v1061 = vpack.c.bf16 %v945, %v942
      %v1062 = vpack.c.bf16 %v953, %v950
      %v1063 = vpack.c.bf16 %v961, %v958
      %v1064 = vpack.c.bf16 %v969, %v966
      %v1065 = vpack.c.bf16 %v977, %v974
      %v1066 = vpack.c.bf16 %v985, %v982
      %v1067 = vpack.c.bf16 %v993, %v990
      %v1068 = vpack.c.bf16 %v1001, %v998
      %v1069 = vpack.c.bf16 %v1009, %v1006
      %v1070 = vpack.c.bf16 %v1017, %v1014
      %v1071 = vpack.c.bf16 %v1025, %v1022
      %v1072 = vpack.c.bf16 %v1033, %v1030
      %v1073 = vpack.c.bf16 %v1041, %v1038
      %v1074 = vpack.c.bf16 %v1049, %v1046
      %v1075 = vpack.c.bf16 %v1057, %v1054
      %v1092 = vunpack.c.l.b16 %v1060
      %v1093 = vunpack.c.h.b16 %v1060
      %v1094 = vunpack.c.l.b16 %v1061
      %v1095 = vunpack.c.h.b16 %v1061
      %v1096 = vunpack.c.l.b16 %v1062
      %v1097 = vunpack.c.h.b16 %v1062
      %v1098 = vunpack.c.l.b16 %v1063
      %v1099 = vunpack.c.h.b16 %v1063
      %v1100 = vunpack.c.l.b16 %v1064
      %v1101 = vunpack.c.h.b16 %v1064
      %v1102 = vunpack.c.l.b16 %v1065
      %v1103 = vunpack.c.h.b16 %v1065
      %v1104 = vunpack.c.l.b16 %v1066
      %v1105 = vunpack.c.h.b16 %v1066
      %v1106 = vunpack.c.l.b16 %v1067
      %v1107 = vunpack.c.h.b16 %v1067
      %v1108 = vunpack.c.l.b16 %v1068
      %v1109 = vunpack.c.h.b16 %v1068
      %v1110 = vunpack.c.l.b16 %v1069
      %v1111 = vunpack.c.h.b16 %v1069
      %v1112 = vunpack.c.l.b16 %v1070
      %v1113 = vunpack.c.h.b16 %v1070
      %v1114 = vunpack.c.l.b16 %v1071
      %v1115 = vunpack.c.h.b16 %v1071
      %v1116 = vunpack.c.l.b16 %v1072
      %v1117 = vunpack.c.h.b16 %v1072
      %v1118 = vunpack.c.l.b16 %v1073
      %v1119 = vunpack.c.h.b16 %v1073
      %v1120 = vunpack.c.l.b16 %v1074
      %v1121 = vunpack.c.h.b16 %v1074
      %v1122 = vunpack.c.l.b16 %v1075
      %v1123 = vunpack.c.h.b16 %v1075
      %v1124 = vpack.c.b16 %v1092, %v1092
      %v1125 = vpack.c.b16 %v1093, %v1093
      %v1126 = vpack.c.b16 %v1094, %v1094
      %v1127 = vpack.c.b16 %v1095, %v1095
      %v1128 = vpack.c.b16 %v1096, %v1096
      %v1129 = vpack.c.b16 %v1097, %v1097
      %v1130 = vpack.c.b16 %v1098, %v1098
      %v1131 = vpack.c.b16 %v1099, %v1099
      %v1132 = vpack.c.b16 %v1100, %v1100
      %v1133 = vpack.c.b16 %v1101, %v1101
      %v1134 = vpack.c.b16 %v1102, %v1102
      %v1135 = vpack.c.b16 %v1103, %v1103
      %v1136 = vpack.c.b16 %v1104, %v1104
      %v1137 = vpack.c.b16 %v1105, %v1105
      %v1138 = vpack.c.b16 %v1106, %v1106
      %v1139 = vpack.c.b16 %v1107, %v1107
      %v1140 = vpack.c.b16 %v1108, %v1108
      %v1141 = vpack.c.b16 %v1109, %v1109
      %v1142 = vpack.c.b16 %v1110, %v1110
      %v1143 = vpack.c.b16 %v1111, %v1111
      %v1144 = vpack.c.b16 %v1112, %v1112
      %v1145 = vpack.c.b16 %v1113, %v1113
      %v1146 = vpack.c.b16 %v1114, %v1114
      %v1147 = vpack.c.b16 %v1115, %v1115
      %v1148 = vpack.c.b16 %v1116, %v1116
      %v1149 = vpack.c.b16 %v1117, %v1117
      %v1150 = vpack.c.b16 %v1118, %v1118
      %v1151 = vpack.c.b16 %v1119, %v1119
      %v1152 = vpack.c.b16 %v1120, %v1120
      %v1153 = vpack.c.b16 %v1121, %v1121
      %v1154 = vpack.c.b16 %v1122, %v1122
      %v1155 = vpack.c.b16 %v1123, %v1123
      %vm1188 = vcmask 150528
      %1189 = vst.msk [vmem:[%s262] sm:$0xf] %vm1188, %v1124
      %1190 = vst.msk [vmem:[%s262 + $0x4] sm:$0xf] %vm1188, %v1125
      %1191 = vst.msk [vmem:[%s262 + $0x8] sm:$0xf] %vm1188, %v1126
      %1192 = vst.msk [vmem:[%s262 + $0xc] sm:$0xf] %vm1188, %v1127
      %1193 = vst.msk [vmem:[%s262 + $0x10] sm:$0xf] %vm1188, %v1128
      %1194 = vst.msk [vmem:[%s262 + $0x14] sm:$0xf] %vm1188, %v1129
      %1195 = vst.msk [vmem:[%s262 + $0x18] sm:$0xf] %vm1188, %v1130
      %1196 = vst.msk [vmem:[%s262 + $0x1c] sm:$0xf] %vm1188, %v1131
      %1197 = vst.msk [vmem:[%s262 + $0x20] sm:$0xf] %vm1188, %v1132
      %1198 = vst.msk [vmem:[%s262 + $0x24] sm:$0xf] %vm1188, %v1133
      %1199 = vst.msk [vmem:[%s262 + $0x28] sm:$0xf] %vm1188, %v1134
      %1200 = vst.msk [vmem:[%s262 + $0x2c] sm:$0xf] %vm1188, %v1135
      %1201 = vst.msk [vmem:[%s262 + $0x30] sm:$0xf] %vm1188, %v1136
      %1202 = vst.msk [vmem:[%s262 + $0x34] sm:$0xf] %vm1188, %v1137
      %1203 = vst.msk [vmem:[%s262 + $0x38] sm:$0xf] %vm1188, %v1138
      %1204 = vst.msk [vmem:[%s262 + $0x3c] sm:$0xf] %vm1188, %v1139
      %1205 = vst.msk [vmem:[%s262 + $0x40] sm:$0xf] %vm1188, %v1140
      %1206 = vst.msk [vmem:[%s262 + $0x44] sm:$0xf] %vm1188, %v1141
      %1207 = vst.msk [vmem:[%s262 + $0x48] sm:$0xf] %vm1188, %v1142
      %1208 = vst.msk [vmem:[%s262 + $0x4c] sm:$0xf] %vm1188, %v1143
      %1209 = vst.msk [vmem:[%s262 + $0x50] sm:$0xf] %vm1188, %v1144
      %1210 = vst.msk [vmem:[%s262 + $0x54] sm:$0xf] %vm1188, %v1145
      %1211 = vst.msk [vmem:[%s262 + $0x58] sm:$0xf] %vm1188, %v1146
      %1212 = vst.msk [vmem:[%s262 + $0x5c] sm:$0xf] %vm1188, %v1147
      %1213 = vst.msk [vmem:[%s262 + $0x60] sm:$0xf] %vm1188, %v1148
      %1214 = vst.msk [vmem:[%s262 + $0x64] sm:$0xf] %vm1188, %v1149
      %1215 = vst.msk [vmem:[%s262 + $0x68] sm:$0xf] %vm1188, %v1150
      %1216 = vst.msk [vmem:[%s262 + $0x6c] sm:$0xf] %vm1188, %v1151
      %1217 = vst.msk [vmem:[%s262 + $0x70] sm:$0xf] %vm1188, %v1152
      %1218 = vst.msk [vmem:[%s262 + $0x74] sm:$0xf] %vm1188, %v1153
      %1219 = vst.msk [vmem:[%s262 + $0x78] sm:$0xf] %vm1188, %v1154
      %1220 = vst.msk [vmem:[%s262 + $0x7c] sm:$0xf] %vm1188, %v1155
      %s1221 = smul.u32 32, %s21
      %p1222 = scmp.lt.s32.totalorder %s20, 1
      %s1223 = scalar_select %p1222, %s20, 1
      %p1224 = scmp.lt.s32.totalorder %s1221, 31
      %s1225 = scalar_select %p1224, %s1221, 31
      %s1226 = smul.addr %s1223, 32
      %s1227 = sadd.s32 %s1225, %s1226
      %s1228 = smul.addr %s1227, 4
      %s1229 = scalar_lea.vmem %s5, %s1228
      // Predicated region
      $region41: #{tpu_custom_call.1} parent=39 // pred_check
        %p1230 = pneg %p160
      $region42: #{tpu_custom_call.1} parent=39 // pred_check_branch
        %1232 = sbr.rel (%p1230) target = $region44
      $region43: #{tpu_custom_call.1} parent=39 // pred_region
        %s1233 = smul.u32 32, %s21
      $region44: #{tpu_custom_call.1} parent=39 // pred_fallthru
        _
    $region40: #{tpu_custom_call.1} parent=5 // pred_fallthru
      _
    %p1234 = scmp.le.s32.totalorder 2, %s11
    // Predicated region
    $region45: #{tpu_custom_call.1} parent=5 // pred_check
      %p1235 = pneg %p1234
    $region46: #{tpu_custom_call.1} parent=5 // pred_check_branch
      %1237 = sbr.rel (%p1235) target = $region48
    $region47: #{tpu_custom_call.1} parent=5 // pred_region
      %s1238 = ssub.s32 %s11, 2
      // Predicated region
      $region49: #{tpu_custom_call.1} parent=47 // pred_check
        %p1239 = pneg %p166
      $region50: #{tpu_custom_call.1} parent=47 // pred_check_branch
        %1241 = sbr.rel (%p1239) target = $region52
      $region51: #{tpu_custom_call.1} parent=47 // pred_region
        %s1242 = smul.u32 32, %s23
        %p1243 = scmp.lt.s32.totalorder %s22, 1
        %s1244 = scalar_select %p1243, %s22, 1
        %p1245 = scmp.lt.s32.totalorder %s1242, 31
        %s1246 = scalar_select %p1245, %s1242, 31
        %s1247 = smul.addr %s1244, 32
        %s1248 = sadd.s32 %s1246, %s1247
        %s1249 = smul.addr %s1248, 4
        %s1250 = scalar_lea.vmem %s5, %s1249
      $region52: #{tpu_custom_call.1} parent=47 // pred_fallthru
        _
    $region48: #{tpu_custom_call.1} parent=5 // pred_fallthru
      _
  $region6: #{tpu_custom_call.1} parent=0 // loop_footer
    %s15 = sadd.s32 1, %s11
  $region7: #{tpu_custom_call.1} parent=0 // loop_footer_branch
    %10 = sbr.rel target = $region3
  $region8: #{tpu_custom_call.1} parent=0 // loop_exit
    _

// kernel: tpu_custom_call.1
$region0: #{tpu_custom_call.1}
  #allocation0 [shape = 'u32[]', space=smem, size = 0x4, offset = 0x4, fixed_abs, tag = 'smem constant byte address 0x4 - core index']
  #allocation1 [shape = 'u32[144,128]{1,0:T(1,128)}', space=vmem, size = 0x12000, scoped, tag = 'internal scratch']
  %s0 = inlined_call_operand.vmem [shape: bf16[2,256,36], index: 0, kind: input, shape index: {}]
  %s1 = inlined_call_operand.vmem [shape: bf16[36,256], index: 1, kind: input, shape index: {}]
  %s2 = inlined_call_operand.vmem [shape: f32[1,256], index: 2, kind: input, shape index: {}]
  %s3 = inlined_call_operand.vmem [shape: bf16[256,19], index: 3, kind: input, shape index: {}]
  %s4 = inlined_call_operand.vmem [shape: f32[1,19], index: 4, kind: input, shape index: {}]
  %s5 = inlined_call_operand.vmem [shape: bf16[2,256,19], index: 5, kind: output, shape index: {}]
  %s6 = sld [smem:[#allocation0]]
  $region53: #{tpu_custom_call.1} parent=0
    _
  %s8 = ssub.s32 1, %s6
  %s9 = scalar_select 0, %s8, %s6
  loop: start=0, step=1, limit=4
  $region2: #{tpu_custom_call.1} parent=0 // loop_pre_header
    _
  $region3: #{tpu_custom_call.1} parent=0 // loop_header
    %s11 = sphi 0, %s15
    %p12 = scmp.ge.s32.totalorder %s11, 4
    %s18 = sphi 0, %s30
    %s19 = sphi 0, %s26
    %s20 = sphi 0, %s18
    %s21 = sphi 0, %s19
    %s22 = sphi 0, %s20
    %s23 = sphi 0, %s21
    %s35 = sphi 0, %s37
    %s38 = sphi 0, %s35
    %s39 = sphi 0, %s38
    %s55 = sphi 0, %s39
    %s59 = sphi 0, %s59
    %s61 = sphi 0, %s59
    %s62 = sphi 0, %s61
    %s76 = sphi 0, %s62
    %s80 = sphi 0, %s80
    %s82 = sphi 0, %s80
    %s83 = sphi 0, %s82
    %s97 = sphi 0, %s83
    %s101 = sphi 0, %s101
    %s103 = sphi 0, %s101
    %s104 = sphi 0, %s103
    %s118 = sphi 0, %s104
    %s122 = sphi 0, %s122
    %s124 = sphi 0, %s122
    %s125 = sphi 0, %s124
    %s139 = sphi 0, %s125
    %s147 = sphi 0, %s149
    %s150 = sphi 0, %s147
    %s151 = sphi 0, %s150
    %s167 = sphi 0, %s151
  $region4: #{tpu_custom_call.1} parent=0 // loop_header_branch
    %14 = sbr.rel (%p12) target = $region8
  $region5: #{tpu_custom_call.1} parent=0 // loop_body
    %s16 = ssub.s32 %s11, 1
    %s17 = ssub.s32 %s11, 2
    %s24 = sadd.s32 1, %s19
    %p25 = scmp.ge.s32.totalorder %s24, 1
    %s26 = scalar_select %p25, 0, %s24
    %s27 = sadd.s32 1, %s18
    %s28 = scalar_select %p25, %s27, %s18
    %p29 = scmp.ge.s32.totalorder %s28, 2
    %s30 = scalar_select %p29, 0, %s28
    %s31 = ssub.s32 %s18, %s30
    %s32 = ssub.s32 %s19, %s26
    %s33 = sor.u32 %s31, %s32
    %p34 = scmp.eq.s32.totalorder %s33, 0
    %s36 = sadd.s32 %s35, 1
    %s37 = scalar_select %p34, %s35, %s36
    %p40 = pneg %p34
    %p41 = scmp.eq.s32.totalorder %s11, 1
    %p42 = por %p40, %p41
    %p43 = scmp.ne.s32.totalorder %s35, %s38
    %p44 = scmp.eq.s32.totalorder %s11, 0
    %p45 = por %p43, %p44
    %p46 = scmp.ne.s32.totalorder %s35, %s38
    %p47 = scmp.eq.s32.totalorder %s16, 1
    %p48 = por %p46, %p47
    %p49 = scmp.ne.s32.totalorder %s38, %s39
    %p50 = scmp.eq.s32.totalorder %s16, 0
    %p51 = por %p49, %p50
    %p52 = scmp.ne.s32.totalorder %s38, %s39
    %p53 = scmp.eq.s32.totalorder %s17, 1
    %p54 = por %p52, %p53
    %p56 = scmp.ne.s32.totalorder %s39, %s55
    %p57 = scmp.eq.s32.totalorder %s17, 0
    %p58 = por %p56, %p57
    %s60 = sadd.s32 %s59, 1
    %p63 = scmp.eq.s32.totalorder %s11, 1
    %p64 = scmp.ne.s32.totalorder %s59, %s61
    %p65 = scmp.eq.s32.totalorder %s11, 0
    %p66 = por %p64, %p65
    %p67 = scmp.ne.s32.totalorder %s59, %s61
    %p68 = scmp.eq.s32.totalorder %s16, 1
    %p69 = por %p67, %p68
    %p70 = scmp.ne.s32.totalorder %s61, %s62
    %p71 = scmp.eq.s32.totalorder %s16, 0
    %p72 = por %p70, %p71
    %p73 = scmp.ne.s32.totalorder %s61, %s62
    %p74 = scmp.eq.s32.totalorder %s17, 1
    %p75 = por %p73, %p74
    %p77 = scmp.ne.s32.totalorder %s62, %s76
    %p78 = scmp.eq.s32.totalorder %s17, 0
    %p79 = por %p77, %p78
    %s81 = sadd.s32 %s80, 1
    %p84 = scmp.eq.s32.totalorder %s11, 1
    %p85 = scmp.ne.s32.totalorder %s80, %s82
    %p86 = scmp.eq.s32.totalorder %s11, 0
    %p87 = por %p85, %p86
    %p88 = scmp.ne.s32.totalorder %s80, %s82
    %p89 = scmp.eq.s32.totalorder %s16, 1
    %p90 = por %p88, %p89
    %p91 = scmp.ne.s32.totalorder %s82, %s83
    %p92 = scmp.eq.s32.totalorder %s16, 0
    %p93 = por %p91, %p92
    %p94 = scmp.ne.s32.totalorder %s82, %s83
    %p95 = scmp.eq.s32.totalorder %s17, 1
    %p96 = por %p94, %p95
    %p98 = scmp.ne.s32.totalorder %s83, %s97
    %p99 = scmp.eq.s32.totalorder %s17, 0
    %p100 = por %p98, %p99
    %s102 = sadd.s32 %s101, 1
    %p105 = scmp.eq.s32.totalorder %s11, 1
    %p106 = scmp.ne.s32.totalorder %s101, %s103
    %p107 = scmp.eq.s32.totalorder %s11, 0
    %p108 = por %p106, %p107
    %p109 = scmp.ne.s32.totalorder %s101, %s103
    %p110 = scmp.eq.s32.totalorder %s16, 1
    %p111 = por %p109, %p110
    %p112 = scmp.ne.s32.totalorder %s103, %s104
    %p113 = scmp.eq.s32.totalorder %s16, 0
    %p114 = por %p112, %p113
    %p115 = scmp.ne.s32.totalorder %s103, %s104
    %p116 = scmp.eq.s32.totalorder %s17, 1
    %p117 = por %p115, %p116
    %p119 = scmp.ne.s32.totalorder %s104, %s118
    %p120 = scmp.eq.s32.totalorder %s17, 0
    %p121 = por %p119, %p120
    %s123 = sadd.s32 %s122, 1
    %p126 = scmp.eq.s32.totalorder %s11, 1
    %p127 = scmp.ne.s32.totalorder %s122, %s124
    %p128 = scmp.eq.s32.totalorder %s11, 0
    %p129 = por %p127, %p128
    %p130 = scmp.ne.s32.totalorder %s122, %s124
    %p131 = scmp.eq.s32.totalorder %s16, 1
    %p132 = por %p130, %p131
    %p133 = scmp.ne.s32.totalorder %s124, %s125
    %p134 = scmp.eq.s32.totalorder %s16, 0
    %p135 = por %p133, %p134
    %p136 = scmp.ne.s32.totalorder %s124, %s125
    %p137 = scmp.eq.s32.totalorder %s17, 1
    %p138 = por %p136, %p137
    %p140 = scmp.ne.s32.totalorder %s125, %s139
    %p141 = scmp.eq.s32.totalorder %s17, 0
    %p142 = por %p140, %p141
    %s143 = ssub.s32 %s18, %s30
    %s144 = ssub.s32 %s19, %s26
    %s145 = sor.u32 %s143, %s144
    %p146 = scmp.eq.s32.totalorder %s145, 0
    %s148 = sadd.s32 %s147, 1
    %s149 = scalar_select %p146, %s147, %s148
    %p152 = pneg %p146
    %p153 = scmp.eq.s32.totalorder %s11, 1
    %p154 = por %p152, %p153
    %p155 = scmp.ne.s32.totalorder %s147, %s150
    %p156 = scmp.eq.s32.totalorder %s11, 0
    %p157 = por %p155, %p156
    %p158 = scmp.ne.s32.totalorder %s147, %s150
    %p159 = scmp.eq.s32.totalorder %s16, 1
    %p160 = por %p158, %p159
    %p161 = scmp.ne.s32.totalorder %s150, %s151
    %p162 = scmp.eq.s32.totalorder %s16, 0
    %p163 = por %p161, %p162
    %p164 = scmp.ne.s32.totalorder %s150, %s151
    %p165 = scmp.eq.s32.totalorder %s17, 1
    %p166 = por %p164, %p165
    %p168 = scmp.ne.s32.totalorder %s151, %s167
    %p169 = scmp.eq.s32.totalorder %s17, 0
    %p170 = por %p168, %p169
    %p171 = scmp.le.s32.totalorder 1, %s11
    %p172 = scmp.lt.s32.totalorder %s11, 3
    %p173 = pnand %p171, %p172
    %p174 = pneg %p173
    // Predicated region
    $region9: #{tpu_custom_call.1} parent=5 // pred_check
      _
    $region10: #{tpu_custom_call.1} parent=5 // pred_check_branch
      %176 = sbr.rel (%p173) target = $region12
    $region11: #{tpu_custom_call.1} parent=5 // pred_region
      %s177 = ssub.s32 %s11, 1
      // Predicated region
      $region13: #{tpu_custom_call.1} parent=11 // pred_check
        %p178 = pneg %p72
      $region14: #{tpu_custom_call.1} parent=11 // pred_check_branch
        %180 = sbr.rel (%p178) target = $region16
      $region15: #{tpu_custom_call.1} parent=11 // pred_region
        _
      $region16: #{tpu_custom_call.1} parent=11 // pred_fallthru
        _
      // Predicated region
      $region17: #{tpu_custom_call.1} parent=11 // pred_check
        %p181 = pneg %p93
      $region18: #{tpu_custom_call.1} parent=11 // pred_check_branch
        %183 = sbr.rel (%p181) target = $region20
      $region19: #{tpu_custom_call.1} parent=11 // pred_region
        _
      $region20: #{tpu_custom_call.1} parent=11 // pred_fallthru
        _
      // Predicated region
      $region21: #{tpu_custom_call.1} parent=11 // pred_check
        %p184 = pneg %p114
      $region22: #{tpu_custom_call.1} parent=11 // pred_check_branch
        %186 = sbr.rel (%p184) target = $region24
      $region23: #{tpu_custom_call.1} parent=11 // pred_region
        _
      $region24: #{tpu_custom_call.1} parent=11 // pred_fallthru
        _
      // Predicated region
      $region25: #{tpu_custom_call.1} parent=11 // pred_check
        %p187 = pneg %p135
      $region26: #{tpu_custom_call.1} parent=11 // pred_check_branch
        %189 = sbr.rel (%p187) target = $region28
      $region27: #{tpu_custom_call.1} parent=11 // pred_region
        _
      $region28: #{tpu_custom_call.1} parent=11 // pred_fallthru
        _
    $region12: #{tpu_custom_call.1} parent=5 // pred_fallthru
      _
    %p190 = scmp.lt.s32.totalorder %s11, 2
    // Predicated region
    $region29: #{tpu_custom_call.1} parent=5 // pred_check
      %p191 = pneg %p190
    $region30: #{tpu_custom_call.1} parent=5 // pred_check_branch
      %193 = sbr.rel (%p191) target = $region32
    $region31: #{tpu_custom_call.1} parent=5 // pred_region
      // Predicated region
      $region33: #{tpu_custom_call.1} parent=31 // pred_check
        %p194 = pneg %p45
      $region34: #{tpu_custom_call.1} parent=31 // pred_check_branch
        %196 = sbr.rel (%p194) target = $region36
      $region35: #{tpu_custom_call.1} parent=31 // pred_region
        %s197 = smul.u32 32, %s19
        %p198 = scmp.lt.s32.totalorder %s18, 1
        %s199 = scalar_select %p198, %s18, 1
        %p200 = scmp.lt.s32.totalorder %s197, 31
        %s201 = scalar_select %p200, %s197, 31
        %s202 = smul.addr %s199, 32
        %s203 = sadd.s32 %s201, %s202
        %s204 = smul.addr %s203, 4
        %s205 = scalar_lea.vmem %s0, %s204
        %s206 = smul.u32 32, %s19
      $region36: #{tpu_custom_call.1} parent=31 // pred_fallthru
        _
    $region32: #{tpu_custom_call.1} parent=5 // pred_fallthru
      _
    %p207 = scmp.le.s32.totalorder 1, %s11
    %p208 = scmp.lt.s32.totalorder %s11, 3
    %p209 = pnand %p207, %p208
    %p210 = pneg %p209
    // Predicated region
    $region37: #{tpu_custom_call.1} parent=5 // pred_check
      _
    $region38: #{tpu_custom_call.1} parent=5 // pred_check_branch
      %212 = sbr.rel (%p209) target = $region40
    $region39: #{tpu_custom_call.1} parent=5 // pred_region
      %s213 = ssub.s32 %s11, 1
      %s214 = smul.u32 32, %s21
      %p215 = scmp.lt.s32.totalorder %s20, 1
      %s216 = scalar_select %p215, %s20, 1
      %p217 = scmp.lt.s32.totalorder %s214, 31
      %s218 = scalar_select %p217, %s214, 31
      %s219 = smul.addr %s216, 32
      %s220 = sadd.s32 %s218, %s219
      %s221 = smul.addr %s220, 4
      %s222 = scalar_lea.vmem %s0, %s221
      %p223 = pneg %p51
      %p224 = pneg %p48
      %p225 = pneg %p72
      %p226 = pneg %p69
      %p227 = pneg %p93
      %p228 = pneg %p90
      %p229 = pneg %p114
      %p230 = pneg %p111
      %p231 = pneg %p135
      %p232 = pneg %p132
      %p233 = pneg %p163
      %p234 = pneg %p160
      %s235 = smul.u32 32, %s21
      %p236 = scmp.lt.s32.totalorder %s20, 1
      %s237 = scalar_select %p236, %s20, 1
      %p238 = scmp.lt.s32.totalorder %s235, 31
      %s239 = scalar_select %p238, %s235, 31
      %s240 = smul.addr %s237, 32
      %s241 = sadd.s32 %s239, %s240
      %s242 = smul.addr %s241, 4
      %s243 = scalar_lea.vmem %s5, %s242
      %s244 = smul.u32 32, %s21
      %p245 = scmp.lt.s32.totalorder %s20, 1
      %s246 = scalar_select %p245, %s20, 1
      %p247 = scmp.lt.s32.totalorder %s244, 31
      %s248 = scalar_select %p247, %s244, 31
      %s249 = smul.addr %s246, 32
      %s250 = sadd.s32 %s248, %s249
      %s251 = smul.addr %s250, 4
      %s252 = scalar_lea.vmem %s0, %s251
      %s253 = smul.u32 32, %s21
      %s254 = smul.u32 32, %s21
      %p255 = scmp.lt.s32.totalorder %s20, 1
      %s256 = scalar_select %p255, %s20, 1
      %p257 = scmp.lt.s32.totalorder %s254, 31
      %s258 = scalar_select %p257, %s254, 31
      %s259 = smul.addr %s256, 32
      %s260 = sadd.s32 %s258, %s259
      %s261 = smul.addr %s260, 4
      %s262 = scalar_lea.vmem %s5, %s261
      %s263 = smul.u32 32, %s21
      %v265 = vld [vmem:[%s252] sm:$0xf]
      %v266 = vld [vmem:[%s252 + $0x4] sm:$0xf]
      %v267 = vld [vmem:[%s252 + $0x8] sm:$0xf]
      %v268 = vld [vmem:[%s252 + $0xc] sm:$0xf]
      %v269 = vld [vmem:[%s252 + $0x10] sm:$0xf]
      %v270 = vld [vmem:[%s252 + $0x14] sm:$0xf]
      %v271 = vld [vmem:[%s252 + $0x18] sm:$0xf]
      %v272 = vld [vmem:[%s252 + $0x1c] sm:$0xf]
      %v273 = vld [vmem:[%s252 + $0x20] sm:$0xf]
      %v274 = vld [vmem:[%s252 + $0x24] sm:$0xf]
      %v275 = vld [vmem:[%s252 + $0x28] sm:$0xf]
      %v276 = vld [vmem:[%s252 + $0x2c] sm:$0xf]
      %v277 = vld [vmem:[%s252 + $0x30] sm:$0xf]
      %v278 = vld [vmem:[%s252 + $0x34] sm:$0xf]
      %v279 = vld [vmem:[%s252 + $0x38] sm:$0xf]
      %v280 = vld [vmem:[%s252 + $0x3c] sm:$0xf]
      %v281 = vld [vmem:[%s252 + $0x40] sm:$0xf]
      %v282 = vld [vmem:[%s252 + $0x44] sm:$0xf]
      %v283 = vld [vmem:[%s252 + $0x48] sm:$0xf]
      %v284 = vld [vmem:[%s252 + $0x4c] sm:$0xf]
      %v285 = vld [vmem:[%s252 + $0x50] sm:$0xf]
      %v286 = vld [vmem:[%s252 + $0x54] sm:$0xf]
      %v287 = vld [vmem:[%s252 + $0x58] sm:$0xf]
      %v288 = vld [vmem:[%s252 + $0x5c] sm:$0xf]
      %v289 = vld [vmem:[%s252 + $0x60] sm:$0xf]
      %v290 = vld [vmem:[%s252 + $0x64] sm:$0xf]
      %v291 = vld [vmem:[%s252 + $0x68] sm:$0xf]
      %v292 = vld [vmem:[%s252 + $0x6c] sm:$0xf]
      %v293 = vld [vmem:[%s252 + $0x70] sm:$0xf]
      %v294 = vld [vmem:[%s252 + $0x74] sm:$0xf]
      %v295 = vld [vmem:[%s252 + $0x78] sm:$0xf]
      %v296 = vld [vmem:[%s252 + $0x7c] sm:$0xf]
      %v297 = vld [vmem:[%s1] sm:$0xff]
      %v298 = vld [vmem:[%s1 + $0x8] sm:$0xff]
      %v299 = vld [vmem:[%s1 + $0x10] sm:$0xff]
      %v300 = vld [vmem:[%s1 + $0x18] sm:$0xff]
      %v301 = vld [vmem:[%s1 + $0x20] sm:$0x33]
      %v302 = vld [vmem:[%s2] sm:$0x3]
      %v304 = vlaneseq
      %v305 = vshrl.u32 %v304, 7
      %v306 = vsub.s32 0, %v305
      %v307 = vrot.slane %v302, %v306
      %v308 = vlaneseq
      %v309 = vshrl.u32 %v308, 7
      %v310 = vsub.s32 1, %v309
      %v311 = vrot.slane %v302, %v310
      %v346 = vunpack.c.l.b16 %v265
      %v347 = vunpack.c.l.b16 %v266
      %v348 = vunpack.c.l.b16 %v267
      %v349 = vunpack.c.l.b16 %v268
      %v350 = vunpack.c.l.b16 %v269
      %v351 = vunpack.c.l.b16 %v270
      %v352 = vunpack.c.l.b16 %v271
      %v353 = vunpack.c.l.b16 %v272
      %v354 = vunpack.c.l.b16 %v273
      %v355 = vunpack.c.l.b16 %v274
      %v356 = vunpack.c.l.b16 %v275
      %v357 = vunpack.c.l.b16 %v276
      %v358 = vunpack.c.l.b16 %v277
      %v359 = vunpack.c.l.b16 %v278
      %v360 = vunpack.c.l.b16 %v279
      %v361 = vunpack.c.l.b16 %v280
      %v362 = vunpack.c.l.b16 %v281
      %v363 = vunpack.c.l.b16 %v282
      %v364 = vunpack.c.l.b16 %v283
      %v365 = vunpack.c.l.b16 %v284
      %v366 = vunpack.c.l.b16 %v285
      %v367 = vunpack.c.l.b16 %v286
      %v368 = vunpack.c.l.b16 %v287
      %v369 = vunpack.c.l.b16 %v288
      %v370 = vunpack.c.l.b16 %v289
      %v371 = vunpack.c.l.b16 %v290
      %v372 = vunpack.c.l.b16 %v291
      %v373 = vunpack.c.l.b16 %v292
      %v374 = vunpack.c.l.b16 %v293
      %v375 = vunpack.c.l.b16 %v294
      %v376 = vunpack.c.l.b16 %v295
      %v377 = vunpack.c.l.b16 %v296
      %v378 = vpack.c.b16 %v347, %v346
      %v379 = vpack.c.b16 %v349, %v348
      %v380 = vpack.c.b16 %v351, %v350
      %v381 = vpack.c.b16 %v353, %v352
      %v382 = vpack.c.b16 %v355, %v354
      %v383 = vpack.c.b16 %v357, %v356
      %v384 = vpack.c.b16 %v359, %v358
      %v385 = vpack.c.b16 %v361, %v360
      %v386 = vpack.c.b16 %v363, %v362
      %v387 = vpack.c.b16 %v365, %v364
      %v388 = vpack.c.b16 %v367, %v366
      %v389 = vpack.c.b16 %v369, %v368
      %v390 = vpack.c.b16 %v371, %v370
      %v391 = vpack.c.b16 %v373, %v372
      %v392 = vpack.c.b16 %v375, %v374
      %v393 = vpack.c.b16 %v377, %v376
      %v399 = vunpack.c.l.b16 %v297
      %v400 = vunpack.c.h.b16 %v297
      %v401 = vunpack.c.l.b16 %v298
      %v402 = vunpack.c.h.b16 %v298
      %v403 = vunpack.c.l.b16 %v299
      %v404 = vunpack.c.h.b16 %v299
      %v405 = vunpack.c.l.b16 %v300
      %v406 = vunpack.c.h.b16 %v300
      %v407 = vunpack.c.l.b16 %v301
      %v408 = vunpack.c.h.b16 %v301
      %v409 = vpack.c.b16 %v401, %v399
      %v410 = vpack.c.b16 %v402, %v400
      %v411 = vpack.c.b16 %v405, %v403
      %v412 = vpack.c.b16 %v406, %v404
      %v413 = vpack.c.b16 %v407, %v407
      %v414 = vpack.c.b16 %v408, %v408
      %vm419 = vcmask 293888
      %v421 = vsel %vm419, %v378, 0
      %v424 = vsel %vm419, %v379, 0
      %v427 = vsel %vm419, %v380, 0
      %v430 = vsel %vm419, %v381, 0
      %v433 = vsel %vm419, %v382, 0
      %v436 = vsel %vm419, %v383, 0
      %v439 = vsel %vm419, %v384, 0
      %v442 = vsel %vm419, %v385, 0
      %v445 = vsel %vm419, %v386, 0
      %v448 = vsel %vm419, %v387, 0
      %v451 = vsel %vm419, %v388, 0
      %v454 = vsel %vm419, %v389, 0
      %v457 = vsel %vm419, %v390, 0
      %v460 = vsel %vm419, %v391, 0
      %v463 = vsel %vm419, %v392, 0
      %v466 = vsel %vm419, %v393, 0
      %vm468 = vcmask 1041408
      %v470 = vsel %vm468, %v413, 0
      %v473 = vsel %vm468, %v414, 0
      %475 = vmatprep.subr.bf16.mxu0 %v410
      %476 = vmatpush1.bf16.msra.mxu0 %v409
      %477 = vmatprep.subr.bf16.mxu0 %v412
      %478 = vmatpush1.bf16.msra.mxu0 %v411
      %479 = vmatprep.subr.bf16.mxu0 %v473
      %480 = vmatpush1.bf16.msra.mxu0 %v470
      %481 = vmatprep.subr.bf16.mxu0 0
      %482 = vmatpush1.bf16.msra.mxu0 0
      %483 = vmatprep.subr.bf16.mxu0 0
      %484 = vmatpush1.bf16.msra.mxu0 0
      %485 = vmatprep.subr.bf16.mxu0 0
      %486 = vmatpush1.bf16.msra.mxu0 0
      %487 = vmatprep.subr.bf16.mxu0 0
      %488 = vmatpush1.bf16.msra.mxu0 0
      %489 = vmatprep.subr.bf16.mxu0 0
      %490 = vmatpush1.bf16.msra.mxu0 0
      %491 = vmatprep.subr.bf16.mxu0 0
      %492 = vmatpush1.bf16.msra.mxu0 0
      %493 = vmatprep.subr.bf16.mxu0 0
      %494 = vmatpush1.bf16.msra.mxu0 0
      %495 = vmatprep.subr.bf16.mxu0 0
      %496 = vmatpush1.bf16.msra.mxu0 0
      %497 = vmatprep.subr.bf16.mxu0 0
      %498 = vmatpush1.bf16.msra.mxu0 0
      %499 = vmatprep.subr.bf16.mxu0 0
      %500 = vmatpush1.bf16.msra.mxu0 0
      %501 = vmatprep.subr.bf16.mxu0 0
      %502 = vmatpush1.bf16.msra.mxu0 0
      %503 = vmatprep.subr.bf16.mxu0 0
      %504 = vmatpush1.bf16.msra.mxu0 0
      %505 = vmatprep.subr.bf16.mxu0 0
      %506 = vmatpush1.bf16.msra.mxu0 0
      %507 = vmatprep.mubr.bf16.mxu0 0
      %508 = vmatmul.mubr.bf16.gmra.mrb[0].mxu0 %v421
      %v509 = vpop.f32.mrb[0].mxu0
      %v510 = vadd.f32 %v307, %v509
      %v511 = vpop.f32.mrb[0].mxu0
      %v512 = vadd.f32 %v311, %v511
      %v513 = vpop.f32.mrb[0].mxu0
      %v514 = vadd.f32 %v307, %v513
      %v515 = vpop.f32.mrb[0].mxu0
      %v516 = vadd.f32 %v311, %v515
      %517 = vmatprep.mubr.bf16.mxu0 0
      %518 = vmatmul.mubr.bf16.gmra.mrb[0].mxu0 %v424
      %v519 = vpop.f32.mrb[0].mxu0
      %v520 = vadd.f32 %v307, %v519
      %v521 = vpop.f32.mrb[0].mxu0
      %v522 = vadd.f32 %v311, %v521
      %v523 = vpop.f32.mrb[0].mxu0
      %v524 = vadd.f32 %v307, %v523
      %v525 = vpop.f32.mrb[0].mxu0
      %v526 = vadd.f32 %v311, %v525
      %527 = vmatprep.mubr.bf16.mxu0 0
      %528 = vmatmul.mubr.bf16.gmra.mrb[0].mxu0 %v427
      %v529 = vpop.f32.mrb[0].mxu0
      %v530 = vadd.f32 %v307, %v529
      %v531 = vpop.f32.mrb[0].mxu0
      %v532 = vadd.f32 %v311, %v531
      %v533 = vpop.f32.mrb[0].mxu0
      %v534 = vadd.f32 %v307, %v533
      %v535 = vpop.f32.mrb[0].mxu0
      %v536 = vadd.f32 %v311, %v535
      %537 = vmatprep.mubr.bf16.mxu0 0
      %538 = vmatmul.mubr.bf16.gmra.mrb[0].mxu0 %v430
      %v539 = vpop.f32.mrb[0].mxu0
      %v540 = vadd.f32 %v307, %v539
      %v541 = vpop.f32.mrb[0].mxu0
      %v542 = vadd.f32 %v311, %v541
      %v543 = vpop.f32.mrb[0].mxu0
      %v544 = vadd.f32 %v307, %v543
      %v545 = vpop.f32.mrb[0].mxu0
      %v546 = vadd.f32 %v311, %v545
      %547 = vmatprep.mubr.bf16.mxu0 0
      %548 = vmatmul.mubr.bf16.gmra.mrb[0].mxu0 %v433
      %v549 = vpop.f32.mrb[0].mxu0
      %v550 = vadd.f32 %v307, %v549
      %v551 = vpop.f32.mrb[0].mxu0
      %v552 = vadd.f32 %v311, %v551
      %v553 = vpop.f32.mrb[0].mxu0
      %v554 = vadd.f32 %v307, %v553
      %v555 = vpop.f32.mrb[0].mxu0
      %v556 = vadd.f32 %v311, %v555
      %557 = vmatprep.mubr.bf16.mxu0 0
      %558 = vmatmul.mubr.bf16.gmra.mrb[0].mxu0 %v436
      %v559 = vpop.f32.mrb[0].mxu0
      %v560 = vadd.f32 %v307, %v559
      %v561 = vpop.f32.mrb[0].mxu0
      %v562 = vadd.f32 %v311, %v561
      %v563 = vpop.f32.mrb[0].mxu0
      %v564 = vadd.f32 %v307, %v563
      %v565 = vpop.f32.mrb[0].mxu0
      %v566 = vadd.f32 %v311, %v565
      %567 = vmatprep.mubr.bf16.mxu0 0
      %568 = vmatmul.mubr.bf16.gmra.mrb[0].mxu0 %v439
      %v569 = vpop.f32.mrb[0].mxu0
      %v570 = vadd.f32 %v307, %v569
      %v571 = vpop.f32.mrb[0].mxu0
      %v572 = vadd.f32 %v311, %v571
      %v573 = vpop.f32.mrb[0].mxu0
      %v574 = vadd.f32 %v307, %v573
      %v575 = vpop.f32.mrb[0].mxu0
      %v576 = vadd.f32 %v311, %v575
      %577 = vmatprep.mubr.bf16.mxu0 0
      %578 = vmatmul.mubr.bf16.gmra.mrb[0].mxu0 %v442
      %v579 = vpop.f32.mrb[0].mxu0
      %v580 = vadd.f32 %v307, %v579
      %v581 = vpop.f32.mrb[0].mxu0
      %v582 = vadd.f32 %v311, %v581
      %v583 = vpop.f32.mrb[0].mxu0
      %v584 = vadd.f32 %v307, %v583
      %v585 = vpop.f32.mrb[0].mxu0
      %v586 = vadd.f32 %v311, %v585
      %587 = vmatprep.mubr.bf16.mxu0 0
      %588 = vmatmul.mubr.bf16.gmra.mrb[0].mxu0 %v445
      %v589 = vpop.f32.mrb[0].mxu0
      %v590 = vadd.f32 %v307, %v589
      %v591 = vpop.f32.mrb[0].mxu0
      %v592 = vadd.f32 %v311, %v591
      %v593 = vpop.f32.mrb[0].mxu0
      %v594 = vadd.f32 %v307, %v593
      %v595 = vpop.f32.mrb[0].mxu0
      %v596 = vadd.f32 %v311, %v595
      %597 = vmatprep.mubr.bf16.mxu0 0
      %598 = vmatmul.mubr.bf16.gmra.mrb[0].mxu0 %v448
      %v599 = vpop.f32.mrb[0].mxu0
      %v600 = vadd.f32 %v307, %v599
      %v601 = vpop.f32.mrb[0].mxu0
      %v602 = vadd.f32 %v311, %v601
      %v603 = vpop.f32.mrb[0].mxu0
      %v604 = vadd.f32 %v307, %v603
      %v605 = vpop.f32.mrb[0].mxu0
      %v606 = vadd.f32 %v311, %v605
      %607 = vmatprep.mubr.bf16.mxu0 0
      %608 = vmatmul.mubr.bf16.gmra.mrb[0].mxu0 %v451
      %v609 = vpop.f32.mrb[0].mxu0
      %v610 = vadd.f32 %v307, %v609
      %v611 = vpop.f32.mrb[0].mxu0
      %v612 = vadd.f32 %v311, %v611
      %v613 = vpop.f32.mrb[0].mxu0
      %v614 = vadd.f32 %v307, %v613
      %v615 = vpop.f32.mrb[0].mxu0
      %v616 = vadd.f32 %v311, %v615
      %617 = vmatprep.mubr.bf16.mxu0 0
      %618 = vmatmul.mubr.bf16.gmra.mrb[0].mxu0 %v454
      %v619 = vpop.f32.mrb[0].mxu0
      %v620 = vadd.f32 %v307, %v619
      %v621 = vpop.f32.mrb[0].mxu0
      %v622 = vadd.f32 %v311, %v621
      %v623 = vpop.f32.mrb[0].mxu0
      %v624 = vadd.f32 %v307, %v623
      %v625 = vpop.f32.mrb[0].mxu0
      %v626 = vadd.f32 %v311, %v625
      %627 = vmatprep.mubr.bf16.mxu0 0
      %628 = vmatmul.mubr.bf16.gmra.mrb[0].mxu0 %v457
      %v629 = vpop.f32.mrb[0].mxu0
      %v630 = vadd.f32 %v307, %v629
      %v631 = vpop.f32.mrb[0].mxu0
      %v632 = vadd.f32 %v311, %v631
      %v633 = vpop.f32.mrb[0].mxu0
      %v634 = vadd.f32 %v307, %v633
      %v635 = vpop.f32.mrb[0].mxu0
      %v636 = vadd.f32 %v311, %v635
      %637 = vmatprep.mubr.bf16.mxu0 0
      %638 = vmatmul.mubr.bf16.gmra.mrb[0].mxu0 %v460
      %v639 = vpop.f32.mrb[0].mxu0
      %v640 = vadd.f32 %v307, %v639
      %v641 = vpop.f32.mrb[0].mxu0
      %v642 = vadd.f32 %v311, %v641
      %v643 = vpop.f32.mrb[0].mxu0
      %v644 = vadd.f32 %v307, %v643
      %v645 = vpop.f32.mrb[0].mxu0
      %v646 = vadd.f32 %v311, %v645
      %647 = vmatprep.mubr.bf16.mxu0 0
      %648 = vmatmul.mubr.bf16.gmra.mrb[0].mxu0 %v463
      %v649 = vpop.f32.mrb[0].mxu0
      %v650 = vadd.f32 %v307, %v649
      %v651 = vpop.f32.mrb[0].mxu0
      %v652 = vadd.f32 %v311, %v651
      %v653 = vpop.f32.mrb[0].mxu0
      %v654 = vadd.f32 %v307, %v653
      %v655 = vpop.f32.mrb[0].mxu0
      %v656 = vadd.f32 %v311, %v655
      %657 = vmatprep.mubr.bf16.mxu0 0
      %658 = vmatmul.mubr.bf16.gmra.mrb[0].mxu0 %v466
      %v659 = vpop.f32.mrb[0].mxu0
      %v660 = vadd.f32 %v307, %v659
      %v661 = vpop.f32.mrb[0].mxu0
      %v662 = vadd.f32 %v311, %v661
      %v663 = vpop.f32.mrb[0].mxu0
      %v664 = vadd.f32 %v307, %v663
      %v665 = vpop.f32.mrb[0].mxu0
      %v666 = vadd.f32 %v311, %v665
      %667 = vdwg.mxu0
      %v668 = vmax.f32 %v510, 0.0
      %v669 = vmax.f32 %v512, 0.0
      %v670 = vmax.f32 %v514, 0.0
      %v671 = vmax.f32 %v516, 0.0
      %v672 = vmax.f32 %v520, 0.0
      %v673 = vmax.f32 %v522, 0.0
      %v674 = vmax.f32 %v524, 0.0
      %v675 = vmax.f32 %v526, 0.0
      %v676 = vmax.f32 %v530, 0.0
      %v677 = vmax.f32 %v532, 0.0
      %v678 = vmax.f32 %v534, 0.0
      %v679 = vmax.f32 %v536, 0.0
      %v680 = vmax.f32 %v540, 0.0
      %v681 = vmax.f32 %v542, 0.0
      %v682 = vmax.f32 %v544, 0.0
      %v683 = vmax.f32 %v546, 0.0
      %v684 = vmax.f32 %v550, 0.0
      %v685 = vmax.f32 %v552, 0.0
      %v686 = vmax.f32 %v554, 0.0
      %v687 = vmax.f32 %v556, 0.0
      %v688 = vmax.f32 %v560, 0.0
      %v689 = vmax.f32 %v562, 0.0
      %v690 = vmax.f32 %v564, 0.0
      %v691 = vmax.f32 %v566, 0.0
      %v692 = vmax.f32 %v570, 0.0
      %v693 = vmax.f32 %v572, 0.0
      %v694 = vmax.f32 %v574, 0.0
      %v695 = vmax.f32 %v576, 0.0
      %v696 = vmax.f32 %v580, 0.0
      %v697 = vmax.f32 %v582, 0.0
      %v698 = vmax.f32 %v584, 0.0
      %v699 = vmax.f32 %v586, 0.0
      %v700 = vmax.f32 %v590, 0.0
      %v701 = vmax.f32 %v592, 0.0
      %v702 = vmax.f32 %v594, 0.0
      %v703 = vmax.f32 %v596, 0.0
      %v704 = vmax.f32 %v600, 0.0
      %v705 = vmax.f32 %v602, 0.0
      %v706 = vmax.f32 %v604, 0.0
      %v707 = vmax.f32 %v606, 0.0
      %v708 = vmax.f32 %v610, 0.0
      %v709 = vmax.f32 %v612, 0.0
      %v710 = vmax.f32 %v614, 0.0
      %v711 = vmax.f32 %v616, 0.0
      %v712 = vmax.f32 %v620, 0.0
      %v713 = vmax.f32 %v622, 0.0
      %v714 = vmax.f32 %v624, 0.0
      %v715 = vmax.f32 %v626, 0.0
      %v716 = vmax.f32 %v630, 0.0
      %v717 = vmax.f32 %v632, 0.0
      %v718 = vmax.f32 %v634, 0.0
      %v719 = vmax.f32 %v636, 0.0
      %v720 = vmax.f32 %v640, 0.0
      %v721 = vmax.f32 %v642, 0.0
      %v722 = vmax.f32 %v644, 0.0
      %v723 = vmax.f32 %v646, 0.0
      %v724 = vmax.f32 %v650, 0.0
      %v725 = vmax.f32 %v652, 0.0
      %v726 = vmax.f32 %v654, 0.0
      %v727 = vmax.f32 %v656, 0.0
      %v728 = vmax.f32 %v660, 0.0
      %v729 = vmax.f32 %v662, 0.0
      %v730 = vmax.f32 %v664, 0.0
      %v731 = vmax.f32 %v666, 0.0
      %v732 = vpack.c.bf16 %v670, %v668
      %v733 = vpack.c.bf16 %v671, %v669
      %v734 = vpack.c.bf16 %v674, %v672
      %v735 = vpack.c.bf16 %v675, %v673
      %v736 = vpack.c.bf16 %v678, %v676
      %v737 = vpack.c.bf16 %v679, %v677
      %v738 = vpack.c.bf16 %v682, %v680
      %v739 = vpack.c.bf16 %v683, %v681
      %v740 = vpack.c.bf16 %v686, %v684
      %v741 = vpack.c.bf16 %v687, %v685
      %v742 = vpack.c.bf16 %v690, %v688
      %v743 = vpack.c.bf16 %v691, %v689
      %v744 = vpack.c.bf16 %v694, %v692
      %v745 = vpack.c.bf16 %v695, %v693
      %v746 = vpack.c.bf16 %v698, %v696
      %v747 = vpack.c.bf16 %v699, %v697
      %v748 = vpack.c.bf16 %v702, %v700
      %v749 = vpack.c.bf16 %v703, %v701
      %v750 = vpack.c.bf16 %v706, %v704
      %v751 = vpack.c.bf16 %v707, %v705
      %v752 = vpack.c.bf16 %v710, %v708
      %v753 = vpack.c.bf16 %v711, %v709
      %v754 = vpack.c.bf16 %v714, %v712
      %v755 = vpack.c.bf16 %v715, %v713
      %v756 = vpack.c.bf16 %v718, %v716
      %v757 = vpack.c.bf16 %v719, %v717
      %v758 = vpack.c.bf16 %v722, %v720
      %v759 = vpack.c.bf16 %v723, %v721
      %v760 = vpack.c.bf16 %v726, %v724
      %v761 = vpack.c.bf16 %v727, %v725
      %v762 = vpack.c.bf16 %v730, %v728
      %v763 = vpack.c.bf16 %v731, %v729
      %v764 = vld [vmem:[%s3] sm:$0xf]
      %v765 = vld [vmem:[%s3 + $0x4] sm:$0xf]
      %v766 = vld [vmem:[%s3 + $0x8] sm:$0xf]
      %v767 = vld [vmem:[%s3 + $0xc] sm:$0xf]
      %v768 = vld [vmem:[%s3 + $0x10] sm:$0xf]
      %v769 = vld [vmem:[%s3 + $0x14] sm:$0xf]
      %v770 = vld [vmem:[%s3 + $0x18] sm:$0xf]
      %v771 = vld [vmem:[%s3 + $0x1c] sm:$0xf]
      %v772 = vld [vmem:[%s3 + $0x20] sm:$0xf]
      %v773 = vld [vmem:[%s3 + $0x24] sm:$0xf]
      %v774 = vld [vmem:[%s3 + $0x28] sm:$0xf]
      %v775 = vld [vmem:[%s3 + $0x2c] sm:$0xf]
      %v776 = vld [vmem:[%s3 + $0x30] sm:$0xf]
      %v777 = vld [vmem:[%s3 + $0x34] sm:$0xf]
      %v778 = vld [vmem:[%s3 + $0x38] sm:$0xf]
      %v779 = vld [vmem:[%s3 + $0x3c] sm:$0xf]
      %v780 = vld [vmem:[%s3 + $0x40] sm:$0xf]
      %v781 = vld [vmem:[%s3 + $0x44] sm:$0xf]
      %v782 = vld [vmem:[%s3 + $0x48] sm:$0xf]
      %v783 = vld [vmem:[%s3 + $0x4c] sm:$0xf]
      %v784 = vld [vmem:[%s3 + $0x50] sm:$0xf]
      %v785 = vld [vmem:[%s3 + $0x54] sm:$0xf]
      %v786 = vld [vmem:[%s3 + $0x58] sm:$0xf]
      %v787 = vld [vmem:[%s3 + $0x5c] sm:$0xf]
      %v788 = vld [vmem:[%s3 + $0x60] sm:$0xf]
      %v789 = vld [vmem:[%s3 + $0x64] sm:$0xf]
      %v790 = vld [vmem:[%s3 + $0x68] sm:$0xf]
      %v791 = vld [vmem:[%s3 + $0x6c] sm:$0xf]
      %v792 = vld [vmem:[%s3 + $0x70] sm:$0xf]
      %v793 = vld [vmem:[%s3 + $0x74] sm:$0xf]
      %v794 = vld [vmem:[%s3 + $0x78] sm:$0xf]
      %v795 = vld [vmem:[%s3 + $0x7c] sm:$0xf]
      %v796 = vld [vmem:[%s4] sm:$0x1]
      %v798 = vlaneseq
      %v799 = vshrl.u32 %v798, 7
      %v800 = vsub.s32 0, %v799
      %v801 = vrot.slane %v796, %v800
      %v835 = vunpack.c.l.b16 %v764
      %v836 = vunpack.c.l.b16 %v765
      %v837 = vunpack.c.l.b16 %v766
      %v838 = vunpack.c.l.b16 %v767
      %v839 = vunpack.c.l.b16 %v768
      %v840 = vunpack.c.l.b16 %v769
      %v841 = vunpack.c.l.b16 %v770
      %v842 = vunpack.c.l.b16 %v771
      %v843 = vunpack.c.l.b16 %v772
      %v844 = vunpack.c.l.b16 %v773
      %v845 = vunpack.c.l.b16 %v774
      %v846 = vunpack.c.l.b16 %v775
      %v847 = vunpack.c.l.b16 %v776
      %v848 = vunpack.c.l.b16 %v777
      %v849 = vunpack.c.l.b16 %v778
      %v850 = vunpack.c.l.b16 %v779
      %v851 = vunpack.c.l.b16 %v780
      %v852 = vunpack.c.l.b16 %v781
      %v853 = vunpack.c.l.b16 %v782
      %v854 = vunpack.c.l.b16 %v783
      %v855 = vunpack.c.l.b16 %v784
      %v856 = vunpack.c.l.b16 %v785
      %v857 = vunpack.c.l.b16 %v786
      %v858 = vunpack.c.l.b16 %v787
      %v859 = vunpack.c.l.b16 %v788
      %v860 = vunpack.c.l.b16 %v789
      %v861 = vunpack.c.l.b16 %v790
      %v862 = vunpack.c.l.b16 %v791
      %v863 = vunpack.c.l.b16 %v792
      %v864 = vunpack.c.l.b16 %v793
      %v865 = vunpack.c.l.b16 %v794
      %v866 = vunpack.c.l.b16 %v795
      %v867 = vpack.c.b16 %v836, %v835
      %v868 = vpack.c.b16 %v838, %v837
      %v869 = vpack.c.b16 %v840, %v839
      %v870 = vpack.c.b16 %v842, %v841
      %v871 = vpack.c.b16 %v844, %v843
      %v872 = vpack.c.b16 %v846, %v845
      %v873 = vpack.c.b16 %v848, %v847
      %v874 = vpack.c.b16 %v850, %v849
      %v875 = vpack.c.b16 %v852, %v851
      %v876 = vpack.c.b16 %v854, %v853
      %v877 = vpack.c.b16 %v856, %v855
      %v878 = vpack.c.b16 %v858, %v857
      %v879 = vpack.c.b16 %v860, %v859
      %v880 = vpack.c.b16 %v862, %v861
      %v881 = vpack.c.b16 %v864, %v863
      %v882 = vpack.c.b16 %v866, %v865
      %899 = vmatprep.subr.bf16.mxu0 0
      %900 = vmatpush1.bf16.msra.mxu0 %v867
      %901 = vmatprep.subr.bf16.mxu0 0
      %902 = vmatpush1.bf16.msra.mxu0 %v868
      %903 = vmatprep.subr.bf16.mxu0 0
      %904 = vmatpush1.bf16.msra.mxu0 %v869
      %905 = vmatprep.subr.bf16.mxu0 0
      %906 = vmatpush1.bf16.msra.mxu0 %v870
      %907 = vmatprep.subr.bf16.mxu0 0
      %908 = vmatpush1.bf16.msra.mxu0 %v871
      %909 = vmatprep.subr.bf16.mxu0 0
      %910 = vmatpush1.bf16.msra.mxu0 %v872
      %911 = vmatprep.subr.bf16.mxu0 0
      %912 = vmatpush1.bf16.msra.mxu0 %v873
      %913 = vmatprep.subr.bf16.mxu0 0
      %914 = vmatpush1.bf16.msra.mxu0 %v874
      %915 = vmatprep.subr.bf16.mxu0 0
      %916 = vmatpush1.bf16.msra.mxu0 %v875
      %917 = vmatprep.subr.bf16.mxu0 0
      %918 = vmatpush1.bf16.msra.mxu0 %v876
      %919 = vmatprep.subr.bf16.mxu0 0
      %920 = vmatpush1.bf16.msra.mxu0 %v877
      %921 = vmatprep.subr.bf16.mxu0 0
      %922 = vmatpush1.bf16.msra.mxu0 %v878
      %923 = vmatprep.subr.bf16.mxu0 0
      %924 = vmatpush1.bf16.msra.mxu0 %v879
      %925 = vmatprep.subr.bf16.mxu0 0
      %926 = vmatpush1.bf16.msra.mxu0 %v880
      %927 = vmatprep.subr.bf16.mxu0 0
      %928 = vmatpush1.bf16.msra.mxu0 %v881
      %929 = vmatprep.subr.bf16.mxu0 0
      %930 = vmatpush1.bf16.msra.mxu0 %v882
      %931 = vmatprep.mubr.bf16.mxu0 %v733
      %932 = vmatmul.mubr.bf16.gmra.mrb[0].mxu0 %v732
      %v933 = vpop.f32.mrb[0].mxu0
      %v934 = vadd.f32 %v801, %v933
      %v935 = vpop.f32.mrb[0].mxu0
      %v936 = vpop.f32.mrb[0].mxu0
      %v937 = vadd.f32 %v801, %v936
      %v938 = vpop.f32.mrb[0].mxu0
      %939 = vmatprep.mubr.bf16.mxu0 %v735
      %940 = vmatmul.mubr.bf16.gmra.mrb[0].mxu0 %v734
      %v941 = vpop.f32.mrb[0].mxu0
      %v942 = vadd.f32 %v801, %v941
      %v943 = vpop.f32.mrb[0].mxu0
      %v944 = vpop.f32.mrb[0].mxu0
      %v945 = vadd.f32 %v801, %v944
      %v946 = vpop.f32.mrb[0].mxu0
      %947 = vmatprep.mubr.bf16.mxu0 %v737
      %948 = vmatmul.mubr.bf16.gmra.mrb[0].mxu0 %v736
      %v949 = vpop.f32.mrb[0].mxu0
      %v950 = vadd.f32 %v801, %v949
      %v951 = vpop.f32.mrb[0].mxu0
      %v952 = vpop.f32.mrb[0].mxu0
      %v953 = vadd.f32 %v801, %v952
      %v954 = vpop.f32.mrb[0].mxu0
      %955 = vmatprep.mubr.bf16.mxu0 %v739
      %956 = vmatmul.mubr.bf16.gmra.mrb[0].mxu0 %v738
      %v957 = vpop.f32.mrb[0].mxu0
      %v958 = vadd.f32 %v801, %v957
      %v959 = vpop.f32.mrb[0].mxu0
      %v960 = vpop.f32.mrb[0].mxu0
      %v961 = vadd.f32 %v801, %v960
      %v962 = vpop.f32.mrb[0].mxu0
      %963 = vmatprep.mubr.bf16.mxu0 %v741
      %964 = vmatmul.mubr.bf16.gmra.mrb[0].mxu0 %v740
      %v965 = vpop.f32.mrb[0].mxu0
      %v966 = vadd.f32 %v801, %v965
      %v967 = vpop.f32.mrb[0].mxu0
      %v968 = vpop.f32.mrb[0].mxu0
      %v969 = vadd.f32 %v801, %v968
      %v970 = vpop.f32.mrb[0].mxu0
      %971 = vmatprep.mubr.bf16.mxu0 %v743
      %972 = vmatmul.mubr.bf16.gmra.mrb[0].mxu0 %v742
      %v973 = vpop.f32.mrb[0].mxu0
      %v974 = vadd.f32 %v801, %v973
      %v975 = vpop.f32.mrb[0].mxu0
      %v976 = vpop.f32.mrb[0].mxu0
      %v977 = vadd.f32 %v801, %v976
      %v978 = vpop.f32.mrb[0].mxu0
      %979 = vmatprep.mubr.bf16.mxu0 %v745
      %980 = vmatmul.mubr.bf16.gmra.mrb[0].mxu0 %v744
      %v981 = vpop.f32.mrb[0].mxu0
      %v982 = vadd.f32 %v801, %v981
      %v983 = vpop.f32.mrb[0].mxu0
      %v984 = vpop.f32.mrb[0].mxu0
      %v985 = vadd.f32 %v801, %v984
      %v986 = vpop.f32.mrb[0].mxu0
      %987 = vmatprep.mubr.bf16.mxu0 %v747
      %988 = vmatmul.mubr.bf16.gmra.mrb[0].mxu0 %v746
      %v989 = vpop.f32.mrb[0].mxu0
      %v990 = vadd.f32 %v801, %v989
      %v991 = vpop.f32.mrb[0].mxu0
      %v992 = vpop.f32.mrb[0].mxu0
      %v993 = vadd.f32 %v801, %v992
      %v994 = vpop.f32.mrb[0].mxu0
      %995 = vmatprep.mubr.bf16.mxu0 %v749
      %996 = vmatmul.mubr.bf16.gmra.mrb[0].mxu0 %v748
      %v997 = vpop.f32.mrb[0].mxu0
      %v998 = vadd.f32 %v801, %v997
      %v999 = vpop.f32.mrb[0].mxu0
      %v1000 = vpop.f32.mrb[0].mxu0
      %v1001 = vadd.f32 %v801, %v1000
      %v1002 = vpop.f32.mrb[0].mxu0
      %1003 = vmatprep.mubr.bf16.mxu0 %v751
      %1004 = vmatmul.mubr.bf16.gmra.mrb[0].mxu0 %v750
      %v1005 = vpop.f32.mrb[0].mxu0
      %v1006 = vadd.f32 %v801, %v1005
      %v1007 = vpop.f32.mrb[0].mxu0
      %v1008 = vpop.f32.mrb[0].mxu0
      %v1009 = vadd.f32 %v801, %v1008
      %v1010 = vpop.f32.mrb[0].mxu0
      %1011 = vmatprep.mubr.bf16.mxu0 %v753
      %1012 = vmatmul.mubr.bf16.gmra.mrb[0].mxu0 %v752
      %v1013 = vpop.f32.mrb[0].mxu0
      %v1014 = vadd.f32 %v801, %v1013
      %v1015 = vpop.f32.mrb[0].mxu0
      %v1016 = vpop.f32.mrb[0].mxu0
      %v1017 = vadd.f32 %v801, %v1016
      %v1018 = vpop.f32.mrb[0].mxu0
      %1019 = vmatprep.mubr.bf16.mxu0 %v755
      %1020 = vmatmul.mubr.bf16.gmra.mrb[0].mxu0 %v754
      %v1021 = vpop.f32.mrb[0].mxu0
      %v1022 = vadd.f32 %v801, %v1021
      %v1023 = vpop.f32.mrb[0].mxu0
      %v1024 = vpop.f32.mrb[0].mxu0
      %v1025 = vadd.f32 %v801, %v1024
      %v1026 = vpop.f32.mrb[0].mxu0
      %1027 = vmatprep.mubr.bf16.mxu0 %v757
      %1028 = vmatmul.mubr.bf16.gmra.mrb[0].mxu0 %v756
      %v1029 = vpop.f32.mrb[0].mxu0
      %v1030 = vadd.f32 %v801, %v1029
      %v1031 = vpop.f32.mrb[0].mxu0
      %v1032 = vpop.f32.mrb[0].mxu0
      %v1033 = vadd.f32 %v801, %v1032
      %v1034 = vpop.f32.mrb[0].mxu0
      %1035 = vmatprep.mubr.bf16.mxu0 %v759
      %1036 = vmatmul.mubr.bf16.gmra.mrb[0].mxu0 %v758
      %v1037 = vpop.f32.mrb[0].mxu0
      %v1038 = vadd.f32 %v801, %v1037
      %v1039 = vpop.f32.mrb[0].mxu0
      %v1040 = vpop.f32.mrb[0].mxu0
      %v1041 = vadd.f32 %v801, %v1040
      %v1042 = vpop.f32.mrb[0].mxu0
      %1043 = vmatprep.mubr.bf16.mxu0 %v761
      %1044 = vmatmul.mubr.bf16.gmra.mrb[0].mxu0 %v760
      %v1045 = vpop.f32.mrb[0].mxu0
      %v1046 = vadd.f32 %v801, %v1045
      %v1047 = vpop.f32.mrb[0].mxu0
      %v1048 = vpop.f32.mrb[0].mxu0
      %v1049 = vadd.f32 %v801, %v1048
      %v1050 = vpop.f32.mrb[0].mxu0
      %1051 = vmatprep.mubr.bf16.mxu0 %v763
      %1052 = vmatmul.mubr.bf16.gmra.mrb[0].mxu0 %v762
      %v1053 = vpop.f32.mrb[0].mxu0
      %v1054 = vadd.f32 %v801, %v1053
      %v1055 = vpop.f32.mrb[0].mxu0
      %v1056 = vpop.f32.mrb[0].mxu0
      %v1057 = vadd.f32 %v801, %v1056
      %v1058 = vpop.f32.mrb[0].mxu0
      %1059 = vdwg.mxu0
      %v1060 = vpack.c.bf16 %v937, %v934
      %v1061 = vpack.c.bf16 %v945, %v942
      %v1062 = vpack.c.bf16 %v953, %v950
      %v1063 = vpack.c.bf16 %v961, %v958
      %v1064 = vpack.c.bf16 %v969, %v966
      %v1065 = vpack.c.bf16 %v977, %v974
      %v1066 = vpack.c.bf16 %v985, %v982
      %v1067 = vpack.c.bf16 %v993, %v990
      %v1068 = vpack.c.bf16 %v1001, %v998
      %v1069 = vpack.c.bf16 %v1009, %v1006
      %v1070 = vpack.c.bf16 %v1017, %v1014
      %v1071 = vpack.c.bf16 %v1025, %v1022
      %v1072 = vpack.c.bf16 %v1033, %v1030
      %v1073 = vpack.c.bf16 %v1041, %v1038
      %v1074 = vpack.c.bf16 %v1049, %v1046
      %v1075 = vpack.c.bf16 %v1057, %v1054
      %v1092 = vunpack.c.l.b16 %v1060
      %v1093 = vunpack.c.h.b16 %v1060
      %v1094 = vunpack.c.l.b16 %v1061
      %v1095 = vunpack.c.h.b16 %v1061
      %v1096 = vunpack.c.l.b16 %v1062
      %v1097 = vunpack.c.h.b16 %v1062
      %v1098 = vunpack.c.l.b16 %v1063
      %v1099 = vunpack.c.h.b16 %v1063
      %v1100 = vunpack.c.l.b16 %v1064
      %v1101 = vunpack.c.h.b16 %v1064
      %v1102 = vunpack.c.l.b16 %v1065
      %v1103 = vunpack.c.h.b16 %v1065
      %v1104 = vunpack.c.l.b16 %v1066
      %v1105 = vunpack.c.h.b16 %v1066
      %v1106 = vunpack.c.l.b16 %v1067
      %v1107 = vunpack.c.h.b16 %v1067
      %v1108 = vunpack.c.l.b16 %v1068
      %v1109 = vunpack.c.h.b16 %v1068
      %v1110 = vunpack.c.l.b16 %v1069
      %v1111 = vunpack.c.h.b16 %v1069
      %v1112 = vunpack.c.l.b16 %v1070
      %v1113 = vunpack.c.h.b16 %v1070
      %v1114 = vunpack.c.l.b16 %v1071
      %v1115 = vunpack.c.h.b16 %v1071
      %v1116 = vunpack.c.l.b16 %v1072
      %v1117 = vunpack.c.h.b16 %v1072
      %v1118 = vunpack.c.l.b16 %v1073
      %v1119 = vunpack.c.h.b16 %v1073
      %v1120 = vunpack.c.l.b16 %v1074
      %v1121 = vunpack.c.h.b16 %v1074
      %v1122 = vunpack.c.l.b16 %v1075
      %v1123 = vunpack.c.h.b16 %v1075
      %v1124 = vpack.c.b16 %v1092, %v1092
      %v1125 = vpack.c.b16 %v1093, %v1093
      %v1126 = vpack.c.b16 %v1094, %v1094
      %v1127 = vpack.c.b16 %v1095, %v1095
      %v1128 = vpack.c.b16 %v1096, %v1096
      %v1129 = vpack.c.b16 %v1097, %v1097
      %v1130 = vpack.c.b16 %v1098, %v1098
      %v1131 = vpack.c.b16 %v1099, %v1099
      %v1132 = vpack.c.b16 %v1100, %v1100
      %v1133 = vpack.c.b16 %v1101, %v1101
      %v1134 = vpack.c.b16 %v1102, %v1102
      %v1135 = vpack.c.b16 %v1103, %v1103
      %v1136 = vpack.c.b16 %v1104, %v1104
      %v1137 = vpack.c.b16 %v1105, %v1105
      %v1138 = vpack.c.b16 %v1106, %v1106
      %v1139 = vpack.c.b16 %v1107, %v1107
      %v1140 = vpack.c.b16 %v1108, %v1108
      %v1141 = vpack.c.b16 %v1109, %v1109
      %v1142 = vpack.c.b16 %v1110, %v1110
      %v1143 = vpack.c.b16 %v1111, %v1111
      %v1144 = vpack.c.b16 %v1112, %v1112
      %v1145 = vpack.c.b16 %v1113, %v1113
      %v1146 = vpack.c.b16 %v1114, %v1114
      %v1147 = vpack.c.b16 %v1115, %v1115
      %v1148 = vpack.c.b16 %v1116, %v1116
      %v1149 = vpack.c.b16 %v1117, %v1117
      %v1150 = vpack.c.b16 %v1118, %v1118
      %v1151 = vpack.c.b16 %v1119, %v1119
      %v1152 = vpack.c.b16 %v1120, %v1120
      %v1153 = vpack.c.b16 %v1121, %v1121
      %v1154 = vpack.c.b16 %v1122, %v1122
      %v1155 = vpack.c.b16 %v1123, %v1123
      %vm1188 = vcmask 150528
      %1189 = vst.msk [vmem:[%s262] sm:$0xf] %vm1188, %v1124
      %1190 = vst.msk [vmem:[%s262 + $0x4] sm:$0xf] %vm1188, %v1125
      %1191 = vst.msk [vmem:[%s262 + $0x8] sm:$0xf] %vm1188, %v1126
      %1192 = vst.msk [vmem:[%s262 + $0xc] sm:$0xf] %vm1188, %v1127
      %1193 = vst.msk [vmem:[%s262 + $0x10] sm:$0xf] %vm1188, %v1128
      %1194 = vst.msk [vmem:[%s262 + $0x14] sm:$0xf] %vm1188, %v1129
      %1195 = vst.msk [vmem:[%s262 + $0x18] sm:$0xf] %vm1188, %v1130
      %1196 = vst.msk [vmem:[%s262 + $0x1c] sm:$0xf] %vm1188, %v1131
      %1197 = vst.msk [vmem:[%s262 + $0x20] sm:$0xf] %vm1188, %v1132
      %1198 = vst.msk [vmem:[%s262 + $0x24] sm:$0xf] %vm1188, %v1133
      %1199 = vst.msk [vmem:[%s262 + $0x28] sm:$0xf] %vm1188, %v1134
      %1200 = vst.msk [vmem:[%s262 + $0x2c] sm:$0xf] %vm1188, %v1135
      %1201 = vst.msk [vmem:[%s262 + $0x30] sm:$0xf] %vm1188, %v1136
      %1202 = vst.msk [vmem:[%s262 + $0x34] sm:$0xf] %vm1188, %v1137
      %1203 = vst.msk [vmem:[%s262 + $0x38] sm:$0xf] %vm1188, %v1138
      %1204 = vst.msk [vmem:[%s262 + $0x3c] sm:$0xf] %vm1188, %v1139
      %1205 = vst.msk [vmem:[%s262 + $0x40] sm:$0xf] %vm1188, %v1140
      %1206 = vst.msk [vmem:[%s262 + $0x44] sm:$0xf] %vm1188, %v1141
      %1207 = vst.msk [vmem:[%s262 + $0x48] sm:$0xf] %vm1188, %v1142
      %1208 = vst.msk [vmem:[%s262 + $0x4c] sm:$0xf] %vm1188, %v1143
      %1209 = vst.msk [vmem:[%s262 + $0x50] sm:$0xf] %vm1188, %v1144
      %1210 = vst.msk [vmem:[%s262 + $0x54] sm:$0xf] %vm1188, %v1145
      %1211 = vst.msk [vmem:[%s262 + $0x58] sm:$0xf] %vm1188, %v1146
      %1212 = vst.msk [vmem:[%s262 + $0x5c] sm:$0xf] %vm1188, %v1147
      %1213 = vst.msk [vmem:[%s262 + $0x60] sm:$0xf] %vm1188, %v1148
      %1214 = vst.msk [vmem:[%s262 + $0x64] sm:$0xf] %vm1188, %v1149
      %1215 = vst.msk [vmem:[%s262 + $0x68] sm:$0xf] %vm1188, %v1150
      %1216 = vst.msk [vmem:[%s262 + $0x6c] sm:$0xf] %vm1188, %v1151
      %1217 = vst.msk [vmem:[%s262 + $0x70] sm:$0xf] %vm1188, %v1152
      %1218 = vst.msk [vmem:[%s262 + $0x74] sm:$0xf] %vm1188, %v1153
      %1219 = vst.msk [vmem:[%s262 + $0x78] sm:$0xf] %vm1188, %v1154
      %1220 = vst.msk [vmem:[%s262 + $0x7c] sm:$0xf] %vm1188, %v1155
      %s1221 = smul.u32 32, %s21
      %p1222 = scmp.lt.s32.totalorder %s20, 1
      %s1223 = scalar_select %p1222, %s20, 1
      %p1224 = scmp.lt.s32.totalorder %s1221, 31
      %s1225 = scalar_select %p1224, %s1221, 31
      %s1226 = smul.addr %s1223, 32
      %s1227 = sadd.s32 %s1225, %s1226
      %s1228 = smul.addr %s1227, 4
      %s1229 = scalar_lea.vmem %s5, %s1228
      // Predicated region
      $region41: #{tpu_custom_call.1} parent=39 // pred_check
        %p1230 = pneg %p160
      $region42: #{tpu_custom_call.1} parent=39 // pred_check_branch
        %1232 = sbr.rel (%p1230) target = $region44
      $region43: #{tpu_custom_call.1} parent=39 // pred_region
        %s1233 = smul.u32 32, %s21
      $region44: #{tpu_custom_call.1} parent=39 // pred_fallthru
        _
    $region40: #{tpu_custom_call.1} parent=5 // pred_fallthru
      _
    %p1234 = scmp.le.s32.totalorder 2, %s11
    // Predicated region
    $region45: #{tpu_custom_call.1} parent=5 // pred_check
      %p1235 = pneg %p1234
    $region46: #{tpu_custom_call.1} parent=5 // pred_check_branch
      %1237 = sbr.rel (%p1235) target = $region48
    $region47: #{tpu_custom_call.1} parent=5 // pred_region
      %s1238 = ssub.s32 %s11, 2
      // Predicated region
      $region49: #{tpu_custom_call.1} parent=47 // pred_check
        %p1239 = pneg %p166
      $region50: #{tpu_custom_call.1} parent=47 // pred_check_branch
        %1241 = sbr.rel (%p1239) target = $region52
      $region51: #{tpu_custom_call.1} parent=47 // pred_region
        %s1242 = smul.u32 32, %s23
        %p1243 = scmp.lt.s32.totalorder %s22, 1
        %s1244 = scalar_select %p1243, %s22, 1
        %p1245 = scmp.lt.s32.totalorder %s1242, 31
        %s1246 = scalar_select %p1245, %s1242, 31
        %s1247 = smul.addr %s1244, 32
        %s1248 = sadd.s32 %s1246, %s1247
        %s1249 = smul.addr %s1248, 4
        %s1250 = scalar_lea.vmem %s5, %s1249
      $region52: #{tpu_custom_call.1} parent=47 // pred_fallthru
        _
    $region48: #{tpu_custom_call.1} parent=5 // pred_fallthru
      _
  $region6: #{tpu_custom_call.1} parent=0 // loop_footer
    %s15 = sadd.s32 1, %s11
  $region7: #{tpu_custom_call.1} parent=0 // loop_footer_branch
    %10 = sbr.rel target = $region3
  $region8: #{tpu_custom_call.1} parent=0 // loop_exit
    _

</llo_original>
